<compile_context>
chip_gen: v6e
topology: v6e:2x2x1
jax: 0.10.0
libtpu: 0.0.40
codegen_flags: <defaults>
</compile_context>

<pallas_src>
import functools
import math

import jax
import jax.numpy as jnp
from jax.experimental import pallas as pl
from jax.experimental.pallas import tpu as pltpu


def _mha_kernel(x_ref, wqkv_ref, wo_ref, bo_ref, o_ref, *,
                n_heads, d_head, seq_len, batch_block):
    """One grid step = `batch_block` batch rows: fused QKV projection, batched
    per-head causal attention, output projection."""
    H, dh, T, bb = n_heads, d_head, seq_len, batch_block
    D = H * dh
    scale = 1.0 / math.sqrt(dh)

    # x is already bf16 (cast wrapper-side). One fused projection matmul with
    # f32 accumulation gives Q|K|V side by side in lanes.
    x = x_ref[...]                                                  # (bb*T, D)
    qkv = jnp.dot(x, wqkv_ref[...], preferred_element_type=jnp.float32)

    # Regroup heads into a leading batch dim G = bb*H once, so the per-head
    # attention is a single batched einsum chain (no per-head 8-lane slices,
    # no scratch slab, no VMEM round trip before the output projection).
    def to_heads(y):                                  # (bb*T, D) -> (G, T, dh)
        y = y.reshape(bb, T, H, dh)
        y = jnp.transpose(y, (0, 2, 1, 3))            # (bb, H, T, dh)
        return y.reshape(bb * H, T, dh).astype(jnp.bfloat16)

    q = to_heads(qkv[:, :D] * scale)     # 1/sqrt(dh) folded into q (T*D elems)
    k = to_heads(qkv[:, D:2 * D])
    v = to_heads(qkv[:, 2 * D:])

    # Causal (lower-triangular) mask, built in-kernel (TPU needs >=2D iota);
    # shared by every (batch, head) slice via broadcasting.
    row = jax.lax.broadcasted_iota(jnp.int32, (T, T), 0)
    col = jax.lax.broadcasted_iota(jnp.int32, (T, T), 1)
    causal = row >= col

    # TODO(synk): for non-toy T, replace the full (T,T) score materialization
    # with a flash-attention style (tq, tk) grid + online softmax; on v7x size
    # the tiles against 64 MiB VMEM. At T=8 one full tile is cheapest.
    s = jnp.einsum('gqd,gkd->gqk', q, k,
                   preferred_element_type=jnp.float32)              # (G, T, T)
    # -inf is safe here because the diagonal is always unmasked.
    # TODO(synk): if an attn_mask / padding path is added, guard fully-masked
    # rows (exp(-inf - (-inf)) = NaN) with a large finite negative instead.
    s = jnp.where(causal, s, -jnp.inf)

    # Numerically stable softmax kept in f32 (v5e VPU/EUP has no bf16 path).
    m = jnp.max(s, axis=-1, keepdims=True)
    p = jnp.exp(s - m)
    p = p * pl.reciprocal(jnp.sum(p, axis=-1, keepdims=True), approx=True)

    # TODO(synk): attention-prob / output dropout omitted (eval mode).
    ctx = jnp.einsum('gqk,gkd->gqd', p.astype(jnp.bfloat16), v,
                     preferred_element_type=jnp.float32)            # (G, T, dh)

    # Heads back to lane-concatenated order, then the output projection.
    ctx = ctx.reshape(bb, H, T, dh)
    ctx = jnp.transpose(ctx, (0, 2, 1, 3)).reshape(bb * T, D)
    out = jnp.dot(ctx.astype(jnp.bfloat16), wo_ref[...],
                  preferred_element_type=jnp.float32) + bo_ref[...]
    # NOTE: D=32 (<128 lanes) makes this a masked vst; production d_model
    # should be a multiple of 128 for lane-dense stores.
    o_ref[...] = out.astype(o_ref.dtype)


def _num_grid_steps(batch):
    """2-way 'parallel' grid on dual-TC chips (v7x); fully collapsed grid on
    single-TC chips (v5e/v6e) to avoid ~0.35us per-step overhead."""
    try:
        kind = jax.devices()[0].device_kind.lower()
    except Exception:
        kind = ""
    if "v7" in kind and batch >= 2 and batch % 2 == 0:
        return 2
    return 1


def multi_head_attention(x, wq, wk, wv, wo, bo, *, num_steps=None):
    """x: (B, T, D); wq/wk/wv: (H, D, d_head); wo: (D, D); bo: (1, D)."""
    B, T, D = x.shape
    H, _, dh = wq.shape
    assert H * dh == D

    if num_steps is None:
        num_steps = _num_grid_steps(B)
    assert B % num_steps == 0, "batch must divide evenly across grid steps"
    bb = B // num_steps                           # batch rows per grid step

    # Fuse the three head-stacked projections into one (D, 3D) slab:
    # columns [0,D)=Q, [D,2D)=K, [2D,3D)=V, each in torch concat-over-heads
    # order. Cast to bf16 once here (half the weight DMA, MXU-ready).
    def fuse(w):                                  # (H, D, dh) -> (D, D)
        return jnp.transpose(w, (1, 0, 2)).reshape(D, H * dh)

    wqkv = jnp.concatenate([fuse(wq), fuse(wk), fuse(wv)], axis=-1)
    wqkv = wqkv.astype(jnp.bfloat16)
    wo_b = wo.astype(jnp.bfloat16)

    # Cast x once wrapper-side and flatten (B,T,D) -> (B*T, D) so each grid
    # step loads one fat, MXU-friendly (bb*T, D) block.
    x2 = x.reshape(B * T, D).astype(jnp.bfloat16)

    kernel = functools.partial(_mha_kernel, n_heads=H, d_head=dh,
                               seq_len=T, batch_block=bb)

    # TODO(synk): at production D, single-buffer the resident weight/bias
    # blocks (pipeline_mode=pl.Buffered(1)) to halve their VMEM footprint.
    out = pl.pallas_call(
        kernel,
        out_shape=jax.ShapeDtypeStruct((B * T, D), x.dtype),
        grid_spec=pltpu.PrefetchScalarGridSpec(
            num_scalar_prefetch=0,
            grid=(num_steps,),
            in_specs=[
                pl.BlockSpec((bb * T, D), lambda b: (b, 0)),   # x (bf16)
                pl.BlockSpec((D, 3 * D), lambda b: (0, 0)),    # Wqkv fused (bf16)
                pl.BlockSpec((D, D), lambda b: (0, 0)),        # Wo (bf16)
                pl.BlockSpec((1, D), lambda b: (0, 0)),        # bo (f32)
            ],
            out_specs=pl.BlockSpec((bb * T, D), lambda b: (b, 0)),
        ),
        compiler_params=pltpu.CompilerParams(
            dimension_semantics=("parallel",),
            vmem_limit_bytes=32 * 1024 * 1024),
    )(x2, wqkv, wo_b, bo)
    return out.reshape(B, T, D)


def _reference(x, wq, wk, wv, wo, bo):
    """Pure-JAX f32 reference mirroring the PyTorch forward (eval mode)."""
    B, T, D = x.shape
    H, _, dh = wq.shape
    causal = jnp.tril(jnp.ones((T, T), dtype=bool))
    outs = []
    for h in range(H):
        q = x @ wq[h]
        k = x @ wk[h]
        v = x @ wv[h]
        s = (q @ jnp.swapaxes(k, -1, -2)) / math.sqrt(dh)
        s = jnp.where(causal, s, -jnp.inf)
        p = jax.nn.softmax(s, axis=-1)
        outs.append(p @ v)
    z = jnp.concatenate(outs, axis=-1)
    return z @ wo + bo


if __name__ == "__main__":
    # Config: d_model=32, n_heads=4 (d_head=8), context_length=8, batch=2.
    B, T, D, H = 2, 8, 32, 4
    dh = D // H

    key = jax.random.PRNGKey(0)
    kx, kq, kk, kv, kw, kb = jax.random.split(key, 6)

    x = jax.random.normal(kx, (B, T, D), dtype=jnp.float32)
    wq = jax.random.normal(kq, (H, D, dh), dtype=jnp.float32) * 0.1
    wk = jax.random.normal(kk, (H, D, dh), dtype=jnp.float32) * 0.1
    wv = jax.random.normal(kv, (H, D, dh), dtype=jnp.float32) * 0.1
    wo = jax.random.normal(kw, (D, D), dtype=jnp.float32) * 0.1
    bo = jax.random.normal(kb, (1, D), dtype=jnp.float32) * 0.1

    out = multi_head_attention(x, wq, wk, wv, wo, bo)
    out = jax.block_until_ready(out)

    ref = _reference(x, wq, wk, wv, wo, bo)
    assert out.shape == (B, T, D)
    # bf16 MXU operands with f32 accumulation -> loosen tolerance vs f32 ref.
    assert jnp.allclose(out, ref, atol=2e-2, rtol=2e-2), "mismatch vs reference"

    print("KERNEL_OK")
</pallas_src>

<mosaic_0001>
module attributes {stable_mosaic.version = 11 : i64} {
  func.func @_mha_kernel(%arg0: i32, %arg1: memref<16x32xbf16, #tpu.memory_space<vmem>>, %arg2: memref<32x96xbf16, #tpu.memory_space<vmem>>, %arg3: memref<32x32xbf16, #tpu.memory_space<vmem>>, %arg4: memref<1x32xf32, #tpu.memory_space<vmem>>, %arg5: memref<16x32xf32, #tpu.memory_space<vmem>>) attributes {dimension_semantics = [#tpu.dimension_semantics<parallel>], iteration_bounds = array<i64: 1>, scalar_prefetch = 0 : i64, scratch_operands = 0 : i64, tpu.core_type = #tpu.core_type<tc>, window_params = [{transform_indices = @transform_0, window_bounds = array<i64: 16, 32>}, {pipeline_mode = #tpu.pipeline_mode<synchronous>, transform_indices = @transform_1, window_bounds = array<i64: 32, 96>}, {pipeline_mode = #tpu.pipeline_mode<synchronous>, transform_indices = @transform_2, window_bounds = array<i64: 32, 32>}, {pipeline_mode = #tpu.pipeline_mode<synchronous>, transform_indices = @transform_3, window_bounds = array<i64: 1, 32>}, {transform_indices = @transform_4, window_bounds = array<i64: 16, 32>}]} {
    %c0 = arith.constant 0 : index
    %c0_0 = arith.constant 0 : index
    %0 = vector.load %arg1[%c0, %c0_0] : memref<16x32xbf16, #tpu.memory_space<vmem>>, vector<16x32xbf16>
    %c0_1 = arith.constant 0 : index
    %c0_2 = arith.constant 0 : index
    %1 = vector.load %arg2[%c0_1, %c0_2] : memref<32x96xbf16, #tpu.memory_space<vmem>>, vector<32x96xbf16>
    %cst = arith.constant dense<0.000000e+00> : vector<16x96xf32>
    %2 = tpu.matmul %0, %1, %cst {dimension_numbers = #tpu.dot_dimension_numbers<[1], [0], [0], [1], [0, 0, 1, 1], [], []>} : vector<16x32xbf16>, vector<32x96xbf16>, vector<16x96xf32> -> vector<16x96xf32>
    %3 = vector.extract_strided_slice %2 {offsets = [0, 0], sizes = [16, 32], strides = [1, 1]} : vector<16x96xf32> to vector<16x32xf32>
    %cst_3 = arith.constant 0.353553385 : f32
    %4 = vector.broadcast %cst_3 : f32 to vector<16x32xf32>
    %5 = arith.mulf %3, %4 : vector<16x32xf32>
    %6 = vector.shape_cast %5 : vector<16x32xf32> to vector<2x8x4x8xf32>
    %7 = tpu.transpose %6, [0, 2, 1, 3] : vector<2x8x4x8xf32> -> vector<2x4x8x8xf32>
    %8 = vector.shape_cast %7 : vector<2x4x8x8xf32> to vector<8x8x8xf32>
    %9 = arith.truncf %8 : vector<8x8x8xf32> to vector<8x8x8xbf16>
    %10 = vector.extract_strided_slice %2 {offsets = [0, 32], sizes = [16, 32], strides = [1, 1]} : vector<16x96xf32> to vector<16x32xf32>
    %11 = vector.shape_cast %10 : vector<16x32xf32> to vector<2x8x4x8xf32>
    %12 = tpu.transpose %11, [0, 2, 1, 3] : vector<2x8x4x8xf32> -> vector<2x4x8x8xf32>
    %13 = vector.shape_cast %12 : vector<2x4x8x8xf32> to vector<8x8x8xf32>
    %14 = arith.truncf %13 : vector<8x8x8xf32> to vector<8x8x8xbf16>
    %15 = vector.extract_strided_slice %2 {offsets = [0, 64], sizes = [16, 32], strides = [1, 1]} : vector<16x96xf32> to vector<16x32xf32>
    %16 = vector.shape_cast %15 : vector<16x32xf32> to vector<2x8x4x8xf32>
    %17 = tpu.transpose %16, [0, 2, 1, 3] : vector<2x8x4x8xf32> -> vector<2x4x8x8xf32>
    %18 = vector.shape_cast %17 : vector<2x4x8x8xf32> to vector<8x8x8xf32>
    %19 = arith.truncf %18 : vector<8x8x8xf32> to vector<8x8x8xbf16>
    %20 = tpu.iota {dimensions = array<i32: 0>} : vector<8x8xi32>
    %21 = tpu.iota {dimensions = array<i32: 1>} : vector<8x8xi32>
    %22 = arith.cmpi sge, %20, %21 : vector<8x8xi32>
    "tpu.trace_start"() <{level = 10 : i32, message = "gqd,gkd->gqk"}> : () -> ()
    %cst_4 = arith.constant dense<0.000000e+00> : vector<8x8x8xf32>
    %23 = tpu.matmul %9, %14, %cst_4 {dimension_numbers = #tpu.dot_dimension_numbers<[2], [2], [1], [1], [0, 0, 0, 1, 1, 1], [0], [0]>} : vector<8x8x8xbf16>, vector<8x8x8xbf16>, vector<8x8x8xf32> -> vector<8x8x8xf32>
    %cst_5 = arith.constant 0xFF800000 : f32
    "tpu.trace_stop"() : () -> ()
    %24 = vector.shape_cast %22 : vector<8x8xi1> to vector<1x8x8xi1>
    %25 = vector.broadcast %24 : vector<1x8x8xi1> to vector<8x8x8xi1>
    %26 = vector.broadcast %cst_5 : f32 to vector<8x8x8xf32>
    %27 = arith.select %25, %23, %26 : vector<8x8x8xi1>, vector<8x8x8xf32>
    %cst_6 = arith.constant dense<0xFF800000> : vector<8x8xf32>
    %28 = vector.multi_reduction <maximumf>, %27, %cst_6 [2] : vector<8x8x8xf32> to vector<8x8xf32>
    %29 = vector.shape_cast %28 : vector<8x8xf32> to vector<8x8x1xf32>
    %30 = vector.broadcast %29 : vector<8x8x1xf32> to vector<8x8x8xf32>
    %31 = arith.subf %27, %30 : vector<8x8x8xf32>
    %32 = math.exp %31 : vector<8x8x8xf32>
    %cst_7 = arith.constant dense<0.000000e+00> : vector<8x8xf32>
    %33 = vector.multi_reduction <add>, %32, %cst_7 [2] : vector<8x8x8xf32> to vector<8x8xf32>
    %34 = vector.shape_cast %33 : vector<8x8xf32> to vector<8x8x1xf32>
    %35 = tpu.reciprocal %34 {approx = true} : vector<8x8x1xf32> -> vector<8x8x1xf32>
    %36 = vector.broadcast %35 : vector<8x8x1xf32> to vector<8x8x8xf32>
    %37 = arith.mulf %32, %36 : vector<8x8x8xf32>
    %38 = arith.truncf %37 : vector<8x8x8xf32> to vector<8x8x8xbf16>
    "tpu.trace_start"() <{level = 10 : i32, message = "gqk,gkd->gqd"}> : () -> ()
    %cst_8 = arith.constant dense<0.000000e+00> : vector<8x8x8xf32>
    %39 = tpu.matmul %38, %19, %cst_8 {dimension_numbers = #tpu.dot_dimension_numbers<[2], [1], [1], [2], [0, 0, 0, 1, 1, 2], [0], [0]>} : vector<8x8x8xbf16>, vector<8x8x8xbf16>, vector<8x8x8xf32> -> vector<8x8x8xf32>
    "tpu.trace_stop"() : () -> ()
    %40 = vector.shape_cast %39 : vector<8x8x8xf32> to vector<2x4x8x8xf32>
    %41 = tpu.transpose %40, [0, 2, 1, 3] : vector<2x4x8x8xf32> -> vector<2x8x4x8xf32>
    %42 = vector.shape_cast %41 : vector<2x8x4x8xf32> to vector<16x32xf32>
    %43 = arith.truncf %42 : vector<16x32xf32> to vector<16x32xbf16>
    %c0_9 = arith.constant 0 : index
    %c0_10 = arith.constant 0 : index
    %44 = vector.load %arg3[%c0_9, %c0_10] : memref<32x32xbf16, #tpu.memory_space<vmem>>, vector<32x32xbf16>
    %cst_11 = arith.constant dense<0.000000e+00> : vector<16x32xf32>
    %45 = tpu.matmul %43, %44, %cst_11 {dimension_numbers = #tpu.dot_dimension_numbers<[1], [0], [0], [1], [0, 0, 1, 1], [], []>} : vector<16x32xbf16>, vector<32x32xbf16>, vector<16x32xf32> -> vector<16x32xf32>
    %c0_12 = arith.constant 0 : index
    %c0_13 = arith.constant 0 : index
    %46 = vector.load %arg4[%c0_12, %c0_13] : memref<1x32xf32, #tpu.memory_space<vmem>>, vector<1x32xf32>
    %47 = vector.broadcast %46 : vector<1x32xf32> to vector<16x32xf32>
    %48 = arith.addf %45, %47 : vector<16x32xf32>
    %c0_14 = arith.constant 0 : index
    %c0_15 = arith.constant 0 : index
    %49 = vector.load %arg5[%c0_14, %c0_15] : memref<16x32xf32, #tpu.memory_space<vmem>>, vector<16x32xf32>
    tpu.vector_store %arg5[%c0_14, %c0_15], %48 {strides = array<i32>} : memref<16x32xf32, #tpu.memory_space<vmem>>, vector<16x32xf32>,
    return
  }
  func.func @transform_0(%arg0: i32) -> (i32, i32) {
    %c0_i32 = arith.constant 0 : i32
    %c0_i32_0 = arith.constant 0 : i32
    return %arg0, %c0_i32 : i32, i32
  }
  func.func @transform_1(%arg0: i32) -> (i32, i32) {
    %c0_i32 = arith.constant 0 : i32
    %c0_i32_0 = arith.constant 0 : i32
    %c0_i32_1 = arith.constant 0 : i32
    return %c0_i32, %c0_i32_0 : i32, i32
  }
  func.func @transform_2(%arg0: i32) -> (i32, i32) {
    %c0_i32 = arith.constant 0 : i32
    %c0_i32_0 = arith.constant 0 : i32
    %c0_i32_1 = arith.constant 0 : i32
    return %c0_i32, %c0_i32_0 : i32, i32
  }
  func.func @transform_3(%arg0: i32) -> (i32, i32) {
    %c0_i32 = arith.constant 0 : i32
    %c0_i32_0 = arith.constant 0 : i32
    %c0_i32_1 = arith.constant 0 : i32
    return %c0_i32, %c0_i32_0 : i32, i32
  }
  func.func @transform_4(%arg0: i32) -> (i32, i32) {
    %c0_i32 = arith.constant 0 : i32
    %c0_i32_0 = arith.constant 0 : i32
    return %arg0, %c0_i32 : i32, i32
  }
}

</mosaic_0001>

<llo_original>
// kernel: tpu_custom_call.1
$region0: #{tpu_custom_call.1}
  #allocation0 [shape = 'u32[]', space=smem, size = 0x4, offset = 0x4, fixed_abs, tag = 'smem constant byte address 0x4 - core index']
  #allocation1 [shape = 'u32[144,128]{1,0:T(1,128)}', space=vmem, size = 0x12000, scoped, tag = 'internal scratch']
  %s0 = inlined_call_operand.hbm [shape: bf16[16,32], index: 0, kind: input, shape index: {}]
  %s1 = inlined_call_operand.hbm [shape: bf16[32,96], index: 1, kind: input, shape index: {}]
  %s2 = inlined_call_operand.hbm [shape: bf16[32,32], index: 2, kind: input, shape index: {}]
  %s3 = inlined_call_operand.vmem [shape: f32[1,32], index: 3, kind: input, shape index: {}]
  %s4 = inlined_call_operand.hbm [shape: f32[16,32], index: 4, kind: output, shape index: {}]
  %s5 = sld [smem:[#allocation0]]
  $region38: #{tpu_custom_call.1} parent=0
    _
  %s7 = ssub.s32 1, %s5
  %s8 = scalar_select 0, %s7, %s5
  $region1: #{tpu_custom_call.1} parent=0
    #allocation2 [shape = 'u8[4096]{0}', space=vmem, size = 0x1000, scoped, tag = 'input window, operand 0, single buffered']
    #allocation3 [shape = 's32[1]{0}', space=sflag, size = 0x4, scoped, tag = 'scoped memory for tpu_custom_call.1']
    #allocation4 [shape = 's32[1]{0}', space=sflag, size = 0x4, scoped, tag = 'scoped memory for tpu_custom_call.1']
    #allocation5 [shape = 'u8[8192]{0}', space=vmem, size = 0x2000, scoped, tag = 'input window, operand 1, single buffered']
    #allocation6 [shape = 's32[1]{0}', space=sflag, size = 0x4, scoped, tag = 'scoped memory for tpu_custom_call.1']
    #allocation7 [shape = 'u8[8192]{0}', space=vmem, size = 0x2000, scoped, tag = 'input window, operand 2, single buffered']
    #allocation8 [shape = 'u8[8192]{0}', space=vmem, size = 0x2000, scoped, tag = 'output window, operand 0, single buffered']
    %9 = vsyncpa [#allocation3], 0
    %10 = vsyncpa [#allocation6], 0
    %11 = vsyncpa [#allocation4], 0
    // Predicated region
    $region2: #{tpu_custom_call.1} parent=1 // pred_check
      _
    $region3: #{tpu_custom_call.1} parent=1 // pred_check_branch
      %13 = sbr.rel (0) target = $region5
    $region4: #{tpu_custom_call.1} parent=1 // pred_region
      %s15 = ssub.s32 128, 128
      %16 = vsyncadd [#allocation3], %s15
      %s17 = sshll.u32 [#allocation2], 4
      %s18 = int_to_ptr.vmem [resolvable:$true] %s17
      %23 = dma.hbm_to_vmem [thread:$0]  %s0, 128, %s18, [#allocation3], 64, 64, 4
    $region5: #{tpu_custom_call.1} parent=1 // pred_fallthru
      _
    // Predicated region
    $region6: #{tpu_custom_call.1} parent=1 // pred_check
      _
    $region7: #{tpu_custom_call.1} parent=1 // pred_check_branch
      %25 = sbr.rel (0) target = $region9
    $region8: #{tpu_custom_call.1} parent=1 // pred_region
      %s27 = ssub.s32 256, 256
      %28 = vsyncadd [#allocation6], %s27
      %s29 = sshll.u32 [#allocation5], 4
      %s30 = int_to_ptr.vmem [resolvable:$true] %s29
      %35 = dma.hbm_to_vmem [thread:$0]  %s1, 256, %s30, [#allocation6], 64, 64, 4
    $region9: #{tpu_custom_call.1} parent=1 // pred_fallthru
      _
    // Predicated region
    $region10: #{tpu_custom_call.1} parent=1 // pred_check
      _
    $region11: #{tpu_custom_call.1} parent=1 // pred_check_branch
      %37 = sbr.rel (0) target = $region13
    $region12: #{tpu_custom_call.1} parent=1 // pred_region
      %s39 = ssub.s32 256, 256
      %40 = vsyncadd [#allocation6], %s39
      %s41 = sshll.u32 [#allocation7], 4
      %s42 = int_to_ptr.vmem [resolvable:$true] %s41
      %47 = dma.hbm_to_vmem [thread:$0]  %s2, 256, %s42, [#allocation6], 64, 64, 4
    $region13: #{tpu_custom_call.1} parent=1 // pred_fallthru
      _
    // Predicated region
    $region14: #{tpu_custom_call.1} parent=1 // pred_check
      _
    $region15: #{tpu_custom_call.1} parent=1 // pred_check_branch
      %49 = sbr.rel (0) target = $region17
    $region16: #{tpu_custom_call.1} parent=1 // pred_region
      _
    $region17: #{tpu_custom_call.1} parent=1 // pred_fallthru
      _
    // Predicated region
    $region18: #{tpu_custom_call.1} parent=1 // pred_check
      _
    $region19: #{tpu_custom_call.1} parent=1 // pred_check_branch
      %51 = sbr.rel (0) target = $region21
    $region20: #{tpu_custom_call.1} parent=1 // pred_region
      %52 = dma.done [#allocation3], 128
    $region21: #{tpu_custom_call.1} parent=1 // pred_fallthru
      _
    // Predicated region
    $region22: #{tpu_custom_call.1} parent=1 // pred_check
      _
    $region23: #{tpu_custom_call.1} parent=1 // pred_check_branch
      %54 = sbr.rel (0) target = $region25
    $region24: #{tpu_custom_call.1} parent=1 // pred_region
      %55 = dma.done [#allocation6], 256
    $region25: #{tpu_custom_call.1} parent=1 // pred_fallthru
      _
    // Predicated region
    $region26: #{tpu_custom_call.1} parent=1 // pred_check
      _
    $region27: #{tpu_custom_call.1} parent=1 // pred_check_branch
      %57 = sbr.rel (0) target = $region29
    $region28: #{tpu_custom_call.1} parent=1 // pred_region
      %58 = dma.done [#allocation6], 256
    $region29: #{tpu_custom_call.1} parent=1 // pred_fallthru
      _
    %v60 = vld [vmem:[#allocation2] sm:$0xf]
    %v61 = vld [vmem:[#allocation2 + $0x4] sm:$0xf]
    %v62 = vld [vmem:[#allocation5] sm:$0xf]
    %v63 = vld [vmem:[#allocation5 + $0x4] sm:$0xf]
    %v64 = vld [vmem:[#allocation5 + $0x8] sm:$0xf]
    %v65 = vld [vmem:[#allocation5 + $0xc] sm:$0xf]
    %v68 = vunpack.c.l.b16 %v60
    %v69 = vunpack.c.l.b16 %v61
    %v70 = vpack.c.b16 %v69, %v68
    %v75 = vunpack.c.l.b16 %v62
    %v76 = vunpack.c.l.b16 %v63
    %v77 = vunpack.c.l.b16 %v64
    %v78 = vunpack.c.l.b16 %v65
    %v79 = vpack.c.b16 %v76, %v75
    %v80 = vpack.c.b16 %v78, %v77
    %vm83 = vcmask 261120
    %v85 = vsel %vm83, %v70, 0
    %87 = vmatprep.subr.bf16.mxu0 0
    %88 = vmatpush1.bf16.msra.mxu0 0
    %89 = vmatprep.subr.bf16.mxu0 0
    %90 = vmatpush1.bf16.msra.mxu0 0
    %91 = vmatprep.subr.bf16.mxu0 0
    %92 = vmatpush1.bf16.msra.mxu0 0
    %93 = vmatprep.subr.bf16.mxu0 0
    %94 = vmatpush1.bf16.msra.mxu0 0
    %95 = vmatprep.subr.bf16.mxu0 0
    %96 = vmatpush1.bf16.msra.mxu0 0
    %97 = vmatprep.subr.bf16.mxu0 0
    %98 = vmatpush1.bf16.msra.mxu0 0
    %99 = vmatprep.subr.bf16.mxu0 0
    %100 = vmatpush1.bf16.msra.mxu0 %v80
    %101 = vmatprep.subr.bf16.mxu0 0
    %102 = vmatpush1.bf16.msra.mxu0 %v79
    %103 = vmatprep.subr.bf16.mxu0 0
    %104 = vmatpush2.bf16.msra.mxu0 0
    %105 = vmatprep.subr.bf16.mxu0 0
    %106 = vmatpush2.bf16.msra.mxu0 0
    %107 = vmatprep.subr.bf16.mxu0 0
    %108 = vmatpush2.bf16.msra.mxu0 0
    %109 = vmatprep.subr.bf16.mxu0 0
    %110 = vmatpush2.bf16.msra.mxu0 0
    %111 = vmatprep.subr.bf16.mxu0 0
    %112 = vmatpush2.bf16.msra.mxu0 0
    %113 = vmatprep.subr.bf16.mxu0 0
    %114 = vmatpush2.bf16.msra.mxu0 0
    %115 = vmatprep.subr.bf16.mxu0 0
    %116 = vmatpush2.bf16.msra.mxu0 0
    %117 = vmatprep.subr.bf16.mxu0 0
    %118 = vmatpush2.bf16.msra.mxu0 0
    %119 = vmatprep.mubr.bf16.mxu0 0
    %120 = vmatmul.mubr.bf16.gmra.mxu0 %v85
    %v121 = vpop.f32.mrf.mxu0
    %v122 = vadd.f32 0.0, %v121
    %v123 = vpop.f32.mrf.mxu0
    %v124 = vpop.f32.mrf.mxu0
    %v125 = vadd.f32 0.0, %v124
    %v126 = vpop.f32.mrf.mxu0
    %127 = vdwg.mxu0
    %v128 = vmul.f32 %v122, 0.35355338
    %v129 = vmul.f32 %v125, 0.35355338
    %132 = vrot.lane.b32.xlu0 %v128, 120
    %v133 = vpop.permute.xlu0 %132
    %134 = vrot.lane.b32.xlu0 %v129, 120
    %v135 = vpop.permute.xlu0 %134
    %138 = vrot.lane.b32.xlu0 %v128, 112
    %v139 = vpop.permute.xlu0 %138
    %140 = vrot.lane.b32.xlu0 %v129, 112
    %v141 = vpop.permute.xlu0 %140
    %144 = vrot.lane.b32.xlu0 %v128, 104
    %v145 = vpop.permute.xlu0 %144
    %146 = vrot.lane.b32.xlu0 %v129, 104
    %v147 = vpop.permute.xlu0 %146
    %v150 = vcombine.low %v128, %v139
    %v151 = vcombine.high %v128, %v139
    %v153 = vunpack.c.l.s4 1983009808
    %v154 = vunpack.c.0.s8 %v153
    %v155 = vlaneseq
    %v156 = vshrl.u32 %v155, 7
    %v157 = vsub.s32 %v154, %v156
    %v158 = vrot.slane %v150, %v157
    %v160 = vunpack.c.l.s4 1983009808
    %v161 = vunpack.c.0.s8 %v160
    %v162 = vlaneseq
    %v163 = vshrl.u32 %v162, 7
    %v164 = vsub.s32 %v161, %v163
    %v165 = vrot.slane %v151, %v164
    %v166 = vcombine.low %v133, %v145
    %v167 = vcombine.high %v133, %v145
    %v169 = vunpack.c.l.s4 1983009808
    %v170 = vunpack.c.0.s8 %v169
    %v171 = vlaneseq
    %v172 = vshrl.u32 %v171, 7
    %v173 = vsub.s32 %v170, %v172
    %v174 = vrot.slane %v166, %v173
    %v176 = vunpack.c.l.s4 1983009808
    %v177 = vunpack.c.0.s8 %v176
    %v178 = vlaneseq
    %v179 = vshrl.u32 %v178, 7
    %v180 = vsub.s32 %v177, %v179
    %v181 = vrot.slane %v167, %v180
    %v182 = vcombine.low %v158, %v174
    %v183 = vcombine.high %v158, %v174
    %v185 = vunpack.c.l.s4 1934713408
    %v186 = vunpack.c.0.s8 %v185
    %v187 = vlaneseq
    %v188 = vshrl.u32 %v187, 7
    %v189 = vsub.s32 %v186, %v188
    %v190 = vrot.slane %v182, %v189
    %v192 = vunpack.c.l.s4 1934713408
    %v193 = vunpack.c.0.s8 %v192
    %v194 = vlaneseq
    %v195 = vshrl.u32 %v194, 7
    %v196 = vsub.s32 %v193, %v195
    %v197 = vrot.slane %v183, %v196
    %v198 = vcombine.low %v165, %v181
    %v199 = vcombine.high %v165, %v181
    %v201 = vunpack.c.l.s4 1934713408
    %v202 = vunpack.c.0.s8 %v201
    %v203 = vlaneseq
    %v204 = vshrl.u32 %v203, 7
    %v205 = vsub.s32 %v202, %v204
    %v206 = vrot.slane %v198, %v205
    %v208 = vunpack.c.l.s4 1934713408
    %v209 = vunpack.c.0.s8 %v208
    %v210 = vlaneseq
    %v211 = vshrl.u32 %v210, 7
    %v212 = vsub.s32 %v209, %v211
    %v213 = vrot.slane %v199, %v212
    %v214 = vcombine.high %v190, 0.0
    %v215 = vcombine.high %v197, 0.0
    %v216 = vcombine.high %v206, 0.0
    %v217 = vcombine.high %v213, 0.0
    %v218 = vcombine.low %v129, %v141
    %v219 = vcombine.high %v129, %v141
    %v221 = vunpack.c.l.s4 1983009808
    %v222 = vunpack.c.0.s8 %v221
    %v223 = vlaneseq
    %v224 = vshrl.u32 %v223, 7
    %v225 = vsub.s32 %v222, %v224
    %v226 = vrot.slane %v218, %v225
    %v228 = vunpack.c.l.s4 1983009808
    %v229 = vunpack.c.0.s8 %v228
    %v230 = vlaneseq
    %v231 = vshrl.u32 %v230, 7
    %v232 = vsub.s32 %v229, %v231
    %v233 = vrot.slane %v219, %v232
    %v234 = vcombine.low %v135, %v147
    %v235 = vcombine.high %v135, %v147
    %v237 = vunpack.c.l.s4 1983009808
    %v238 = vunpack.c.0.s8 %v237
    %v239 = vlaneseq
    %v240 = vshrl.u32 %v239, 7
    %v241 = vsub.s32 %v238, %v240
    %v242 = vrot.slane %v234, %v241
    %v244 = vunpack.c.l.s4 1983009808
    %v245 = vunpack.c.0.s8 %v244
    %v246 = vlaneseq
    %v247 = vshrl.u32 %v246, 7
    %v248 = vsub.s32 %v245, %v247
    %v249 = vrot.slane %v235, %v248
    %v250 = vcombine.low %v226, %v242
    %v251 = vcombine.high %v226, %v242
    %v253 = vunpack.c.l.s4 1934713408
    %v254 = vunpack.c.0.s8 %v253
    %v255 = vlaneseq
    %v256 = vshrl.u32 %v255, 7
    %v257 = vsub.s32 %v254, %v256
    %v258 = vrot.slane %v250, %v257
    %v260 = vunpack.c.l.s4 1934713408
    %v261 = vunpack.c.0.s8 %v260
    %v262 = vlaneseq
    %v263 = vshrl.u32 %v262, 7
    %v264 = vsub.s32 %v261, %v263
    %v265 = vrot.slane %v251, %v264
    %v266 = vcombine.low %v233, %v249
    %v267 = vcombine.high %v233, %v249
    %v269 = vunpack.c.l.s4 1934713408
    %v270 = vunpack.c.0.s8 %v269
    %v271 = vlaneseq
    %v272 = vshrl.u32 %v271, 7
    %v273 = vsub.s32 %v270, %v272
    %v274 = vrot.slane %v266, %v273
    %v276 = vunpack.c.l.s4 1934713408
    %v277 = vunpack.c.0.s8 %v276
    %v278 = vlaneseq
    %v279 = vshrl.u32 %v278, 7
    %v280 = vsub.s32 %v277, %v279
    %v281 = vrot.slane %v267, %v280
    %v282 = vcombine.high %v258, 0.0
    %v283 = vcombine.high %v265, 0.0
    %v284 = vcombine.high %v274, 0.0
    %v285 = vcombine.high %v281, 0.0
    %v286 = vcombine.low %v190, %v197
    %v288 = vunpack.c.l.s4 1983009808
    %v289 = vunpack.c.0.s8 %v288
    %v290 = vlaneseq
    %v291 = vshrl.u32 %v290, 7
    %v292 = vsub.s32 %v289, %v291
    %v293 = vrot.slane %v286, %v292
    %v294 = vcombine.low %v214, %v215
    %v296 = vunpack.c.l.s4 1983009808
    %v297 = vunpack.c.0.s8 %v296
    %v298 = vlaneseq
    %v299 = vshrl.u32 %v298, 7
    %v300 = vsub.s32 %v297, %v299
    %v301 = vrot.slane %v294, %v300
    %v302 = vcombine.low %v206, %v213
    %v304 = vunpack.c.l.s4 1983009808
    %v305 = vunpack.c.0.s8 %v304
    %v306 = vlaneseq
    %v307 = vshrl.u32 %v306, 7
    %v308 = vsub.s32 %v305, %v307
    %v309 = vrot.slane %v302, %v308
    %v310 = vcombine.low %v216, %v217
    %v312 = vunpack.c.l.s4 1983009808
    %v313 = vunpack.c.0.s8 %v312
    %v314 = vlaneseq
    %v315 = vshrl.u32 %v314, 7
    %v316 = vsub.s32 %v313, %v315
    %v317 = vrot.slane %v310, %v316
    %v318 = vcombine.low %v293, %v301
    %v319 = vcombine.high %v293, %v301
    %v321 = vunpack.c.l.s4 1934713408
    %v322 = vunpack.c.0.s8 %v321
    %v323 = vlaneseq
    %v324 = vshrl.u32 %v323, 7
    %v325 = vsub.s32 %v322, %v324
    %v326 = vrot.slane %v318, %v325
    %v328 = vunpack.c.l.s4 1934713408
    %v329 = vunpack.c.0.s8 %v328
    %v330 = vlaneseq
    %v331 = vshrl.u32 %v330, 7
    %v332 = vsub.s32 %v329, %v331
    %v333 = vrot.slane %v319, %v332
    %v334 = vcombine.low %v309, %v317
    %v335 = vcombine.high %v309, %v317
    %v337 = vunpack.c.l.s4 1934713408
    %v338 = vunpack.c.0.s8 %v337
    %v339 = vlaneseq
    %v340 = vshrl.u32 %v339, 7
    %v341 = vsub.s32 %v338, %v340
    %v342 = vrot.slane %v334, %v341
    %v344 = vunpack.c.l.s4 1934713408
    %v345 = vunpack.c.0.s8 %v344
    %v346 = vlaneseq
    %v347 = vshrl.u32 %v346, 7
    %v348 = vsub.s32 %v345, %v347
    %v349 = vrot.slane %v335, %v348
    %v350 = vcombine.low %v326, %v342
    %v351 = vcombine.high %v326, %v342
    %v352 = vcombine.low %v333, %v349
    %v353 = vcombine.high %v333, %v349
    %v354 = vcombine.low %v258, %v265
    %v356 = vunpack.c.l.s4 1983009808
    %v357 = vunpack.c.0.s8 %v356
    %v358 = vlaneseq
    %v359 = vshrl.u32 %v358, 7
    %v360 = vsub.s32 %v357, %v359
    %v361 = vrot.slane %v354, %v360
    %v362 = vcombine.low %v282, %v283
    %v364 = vunpack.c.l.s4 1983009808
    %v365 = vunpack.c.0.s8 %v364
    %v366 = vlaneseq
    %v367 = vshrl.u32 %v366, 7
    %v368 = vsub.s32 %v365, %v367
    %v369 = vrot.slane %v362, %v368
    %v370 = vcombine.low %v274, %v281
    %v372 = vunpack.c.l.s4 1983009808
    %v373 = vunpack.c.0.s8 %v372
    %v374 = vlaneseq
    %v375 = vshrl.u32 %v374, 7
    %v376 = vsub.s32 %v373, %v375
    %v377 = vrot.slane %v370, %v376
    %v378 = vcombine.low %v284, %v285
    %v380 = vunpack.c.l.s4 1983009808
    %v381 = vunpack.c.0.s8 %v380
    %v382 = vlaneseq
    %v383 = vshrl.u32 %v382, 7
    %v384 = vsub.s32 %v381, %v383
    %v385 = vrot.slane %v378, %v384
    %v386 = vcombine.low %v361, %v369
    %v387 = vcombine.high %v361, %v369
    %v389 = vunpack.c.l.s4 1934713408
    %v390 = vunpack.c.0.s8 %v389
    %v391 = vlaneseq
    %v392 = vshrl.u32 %v391, 7
    %v393 = vsub.s32 %v390, %v392
    %v394 = vrot.slane %v386, %v393
    %v396 = vunpack.c.l.s4 1934713408
    %v397 = vunpack.c.0.s8 %v396
    %v398 = vlaneseq
    %v399 = vshrl.u32 %v398, 7
    %v400 = vsub.s32 %v397, %v399
    %v401 = vrot.slane %v387, %v400
    %v402 = vcombine.low %v377, %v385
    %v403 = vcombine.high %v377, %v385
    %v405 = vunpack.c.l.s4 1934713408
    %v406 = vunpack.c.0.s8 %v405
    %v407 = vlaneseq
    %v408 = vshrl.u32 %v407, 7
    %v409 = vsub.s32 %v406, %v408
    %v410 = vrot.slane %v402, %v409
    %v412 = vunpack.c.l.s4 1934713408
    %v413 = vunpack.c.0.s8 %v412
    %v414 = vlaneseq
    %v415 = vshrl.u32 %v414, 7
    %v416 = vsub.s32 %v413, %v415
    %v417 = vrot.slane %v403, %v416
    %v418 = vcombine.low %v394, %v410
    %v419 = vcombine.high %v394, %v410
    %v420 = vcombine.low %v401, %v417
    %v421 = vcombine.high %v401, %v417
    %v422 = vpack.c.bf16 %v350, %v350
    %v423 = vpack.c.bf16 %v351, %v351
    %v424 = vpack.c.bf16 %v352, %v352
    %v425 = vpack.c.bf16 %v353, %v353
    %v426 = vpack.c.bf16 %v418, %v418
    %v427 = vpack.c.bf16 %v419, %v419
    %v428 = vpack.c.bf16 %v420, %v420
    %v429 = vpack.c.bf16 %v421, %v421
    %432 = vrot.lane.b32.xlu0 %v122, 120
    %v433 = vpop.permute.xlu0 %432
    %434 = vrot.lane.b32.xlu0 %v125, 120
    %v435 = vpop.permute.xlu0 %434
    %436 = vrot.lane.b32.xlu0 %v122, 112
    %v437 = vpop.permute.xlu0 %436
    %438 = vrot.lane.b32.xlu0 %v125, 112
    %v439 = vpop.permute.xlu0 %438
    %440 = vrot.lane.b32.xlu0 %v122, 104
    %v441 = vpop.permute.xlu0 %440
    %442 = vrot.lane.b32.xlu0 %v125, 104
    %v443 = vpop.permute.xlu0 %442
    %444 = vrot.lane.b32.xlu0 %v122, 96
    %v445 = vpop.permute.xlu0 %444
    %446 = vrot.lane.b32.xlu0 %v125, 96
    %v447 = vpop.permute.xlu0 %446
    %448 = vrot.lane.b32.xlu0 %v433, 96
    %v449 = vpop.permute.xlu0 %448
    %450 = vrot.lane.b32.xlu0 %v435, 96
    %v451 = vpop.permute.xlu0 %450
    %452 = vrot.lane.b32.xlu0 %v437, 96
    %v453 = vpop.permute.xlu0 %452
    %454 = vrot.lane.b32.xlu0 %v439, 96
    %v455 = vpop.permute.xlu0 %454
    %456 = vrot.lane.b32.xlu0 %v441, 96
    %v457 = vpop.permute.xlu0 %456
    %458 = vrot.lane.b32.xlu0 %v443, 96
    %v459 = vpop.permute.xlu0 %458
    %v468 = vcombine.low %v445, %v453
    %v469 = vcombine.high %v445, %v453
    %v471 = vunpack.c.l.s4 1983009808
    %v472 = vunpack.c.0.s8 %v471
    %v473 = vlaneseq
    %v474 = vshrl.u32 %v473, 7
    %v475 = vsub.s32 %v472, %v474
    %v476 = vrot.slane %v468, %v475
    %v478 = vunpack.c.l.s4 1983009808
    %v479 = vunpack.c.0.s8 %v478
    %v480 = vlaneseq
    %v481 = vshrl.u32 %v480, 7
    %v482 = vsub.s32 %v479, %v481
    %v483 = vrot.slane %v469, %v482
    %v484 = vcombine.low %v449, %v457
    %v485 = vcombine.high %v449, %v457
    %v487 = vunpack.c.l.s4 1983009808
    %v488 = vunpack.c.0.s8 %v487
    %v489 = vlaneseq
    %v490 = vshrl.u32 %v489, 7
    %v491 = vsub.s32 %v488, %v490
    %v492 = vrot.slane %v484, %v491
    %v494 = vunpack.c.l.s4 1983009808
    %v495 = vunpack.c.0.s8 %v494
    %v496 = vlaneseq
    %v497 = vshrl.u32 %v496, 7
    %v498 = vsub.s32 %v495, %v497
    %v499 = vrot.slane %v485, %v498
    %v500 = vcombine.low %v476, %v492
    %v501 = vcombine.high %v476, %v492
    %v503 = vunpack.c.l.s4 1934713408
    %v504 = vunpack.c.0.s8 %v503
    %v505 = vlaneseq
    %v506 = vshrl.u32 %v505, 7
    %v507 = vsub.s32 %v504, %v506
    %v508 = vrot.slane %v500, %v507
    %v510 = vunpack.c.l.s4 1934713408
    %v511 = vunpack.c.0.s8 %v510
    %v512 = vlaneseq
    %v513 = vshrl.u32 %v512, 7
    %v514 = vsub.s32 %v511, %v513
    %v515 = vrot.slane %v501, %v514
    %v516 = vcombine.low %v483, %v499
    %v517 = vcombine.high %v483, %v499
    %v519 = vunpack.c.l.s4 1934713408
    %v520 = vunpack.c.0.s8 %v519
    %v521 = vlaneseq
    %v522 = vshrl.u32 %v521, 7
    %v523 = vsub.s32 %v520, %v522
    %v524 = vrot.slane %v516, %v523
    %v526 = vunpack.c.l.s4 1934713408
    %v527 = vunpack.c.0.s8 %v526
    %v528 = vlaneseq
    %v529 = vshrl.u32 %v528, 7
    %v530 = vsub.s32 %v527, %v529
    %v531 = vrot.slane %v517, %v530
    %v532 = vcombine.high %v508, 0.0
    %v533 = vcombine.high %v515, 0.0
    %v534 = vcombine.high %v524, 0.0
    %v535 = vcombine.high %v531, 0.0
    %v536 = vcombine.low %v447, %v455
    %v537 = vcombine.high %v447, %v455
    %v539 = vunpack.c.l.s4 1983009808
    %v540 = vunpack.c.0.s8 %v539
    %v541 = vlaneseq
    %v542 = vshrl.u32 %v541, 7
    %v543 = vsub.s32 %v540, %v542
    %v544 = vrot.slane %v536, %v543
    %v546 = vunpack.c.l.s4 1983009808
    %v547 = vunpack.c.0.s8 %v546
    %v548 = vlaneseq
    %v549 = vshrl.u32 %v548, 7
    %v550 = vsub.s32 %v547, %v549
    %v551 = vrot.slane %v537, %v550
    %v552 = vcombine.low %v451, %v459
    %v553 = vcombine.high %v451, %v459
    %v555 = vunpack.c.l.s4 1983009808
    %v556 = vunpack.c.0.s8 %v555
    %v557 = vlaneseq
    %v558 = vshrl.u32 %v557, 7
    %v559 = vsub.s32 %v556, %v558
    %v560 = vrot.slane %v552, %v559
    %v562 = vunpack.c.l.s4 1983009808
    %v563 = vunpack.c.0.s8 %v562
    %v564 = vlaneseq
    %v565 = vshrl.u32 %v564, 7
    %v566 = vsub.s32 %v563, %v565
    %v567 = vrot.slane %v553, %v566
    %v568 = vcombine.low %v544, %v560
    %v569 = vcombine.high %v544, %v560
    %v571 = vunpack.c.l.s4 1934713408
    %v572 = vunpack.c.0.s8 %v571
    %v573 = vlaneseq
    %v574 = vshrl.u32 %v573, 7
    %v575 = vsub.s32 %v572, %v574
    %v576 = vrot.slane %v568, %v575
    %v578 = vunpack.c.l.s4 1934713408
    %v579 = vunpack.c.0.s8 %v578
    %v580 = vlaneseq
    %v581 = vshrl.u32 %v580, 7
    %v582 = vsub.s32 %v579, %v581
    %v583 = vrot.slane %v569, %v582
    %v584 = vcombine.low %v551, %v567
    %v585 = vcombine.high %v551, %v567
    %v587 = vunpack.c.l.s4 1934713408
    %v588 = vunpack.c.0.s8 %v587
    %v589 = vlaneseq
    %v590 = vshrl.u32 %v589, 7
    %v591 = vsub.s32 %v588, %v590
    %v592 = vrot.slane %v584, %v591
    %v594 = vunpack.c.l.s4 1934713408
    %v595 = vunpack.c.0.s8 %v594
    %v596 = vlaneseq
    %v597 = vshrl.u32 %v596, 7
    %v598 = vsub.s32 %v595, %v597
    %v599 = vrot.slane %v585, %v598
    %v600 = vcombine.high %v576, 0.0
    %v601 = vcombine.high %v583, 0.0
    %v602 = vcombine.high %v592, 0.0
    %v603 = vcombine.high %v599, 0.0
    %v604 = vcombine.low %v508, %v515
    %v606 = vunpack.c.l.s4 1983009808
    %v607 = vunpack.c.0.s8 %v606
    %v608 = vlaneseq
    %v609 = vshrl.u32 %v608, 7
    %v610 = vsub.s32 %v607, %v609
    %v611 = vrot.slane %v604, %v610
    %v612 = vcombine.low %v532, %v533
    %v614 = vunpack.c.l.s4 1983009808
    %v615 = vunpack.c.0.s8 %v614
    %v616 = vlaneseq
    %v617 = vshrl.u32 %v616, 7
    %v618 = vsub.s32 %v615, %v617
    %v619 = vrot.slane %v612, %v618
    %v620 = vcombine.low %v524, %v531
    %v622 = vunpack.c.l.s4 1983009808
    %v623 = vunpack.c.0.s8 %v622
    %v624 = vlaneseq
    %v625 = vshrl.u32 %v624, 7
    %v626 = vsub.s32 %v623, %v625
    %v627 = vrot.slane %v620, %v626
    %v628 = vcombine.low %v534, %v535
    %v630 = vunpack.c.l.s4 1983009808
    %v631 = vunpack.c.0.s8 %v630
    %v632 = vlaneseq
    %v633 = vshrl.u32 %v632, 7
    %v634 = vsub.s32 %v631, %v633
    %v635 = vrot.slane %v628, %v634
    %v636 = vcombine.low %v611, %v619
    %v637 = vcombine.high %v611, %v619
    %v639 = vunpack.c.l.s4 1934713408
    %v640 = vunpack.c.0.s8 %v639
    %v641 = vlaneseq
    %v642 = vshrl.u32 %v641, 7
    %v643 = vsub.s32 %v640, %v642
    %v644 = vrot.slane %v636, %v643
    %v646 = vunpack.c.l.s4 1934713408
    %v647 = vunpack.c.0.s8 %v646
    %v648 = vlaneseq
    %v649 = vshrl.u32 %v648, 7
    %v650 = vsub.s32 %v647, %v649
    %v651 = vrot.slane %v637, %v650
    %v652 = vcombine.low %v627, %v635
    %v653 = vcombine.high %v627, %v635
    %v655 = vunpack.c.l.s4 1934713408
    %v656 = vunpack.c.0.s8 %v655
    %v657 = vlaneseq
    %v658 = vshrl.u32 %v657, 7
    %v659 = vsub.s32 %v656, %v658
    %v660 = vrot.slane %v652, %v659
    %v662 = vunpack.c.l.s4 1934713408
    %v663 = vunpack.c.0.s8 %v662
    %v664 = vlaneseq
    %v665 = vshrl.u32 %v664, 7
    %v666 = vsub.s32 %v663, %v665
    %v667 = vrot.slane %v653, %v666
    %v668 = vcombine.low %v644, %v660
    %v669 = vcombine.high %v644, %v660
    %v670 = vcombine.low %v651, %v667
    %v671 = vcombine.high %v651, %v667
    %v672 = vcombine.low %v576, %v583
    %v674 = vunpack.c.l.s4 1983009808
    %v675 = vunpack.c.0.s8 %v674
    %v676 = vlaneseq
    %v677 = vshrl.u32 %v676, 7
    %v678 = vsub.s32 %v675, %v677
    %v679 = vrot.slane %v672, %v678
    %v680 = vcombine.low %v600, %v601
    %v682 = vunpack.c.l.s4 1983009808
    %v683 = vunpack.c.0.s8 %v682
    %v684 = vlaneseq
    %v685 = vshrl.u32 %v684, 7
    %v686 = vsub.s32 %v683, %v685
    %v687 = vrot.slane %v680, %v686
    %v688 = vcombine.low %v592, %v599
    %v690 = vunpack.c.l.s4 1983009808
    %v691 = vunpack.c.0.s8 %v690
    %v692 = vlaneseq
    %v693 = vshrl.u32 %v692, 7
    %v694 = vsub.s32 %v691, %v693
    %v695 = vrot.slane %v688, %v694
    %v696 = vcombine.low %v602, %v603
    %v698 = vunpack.c.l.s4 1983009808
    %v699 = vunpack.c.0.s8 %v698
    %v700 = vlaneseq
    %v701 = vshrl.u32 %v700, 7
    %v702 = vsub.s32 %v699, %v701
    %v703 = vrot.slane %v696, %v702
    %v704 = vcombine.low %v679, %v687
    %v705 = vcombine.high %v679, %v687
    %v707 = vunpack.c.l.s4 1934713408
    %v708 = vunpack.c.0.s8 %v707
    %v709 = vlaneseq
    %v710 = vshrl.u32 %v709, 7
    %v711 = vsub.s32 %v708, %v710
    %v712 = vrot.slane %v704, %v711
    %v714 = vunpack.c.l.s4 1934713408
    %v715 = vunpack.c.0.s8 %v714
    %v716 = vlaneseq
    %v717 = vshrl.u32 %v716, 7
    %v718 = vsub.s32 %v715, %v717
    %v719 = vrot.slane %v705, %v718
    %v720 = vcombine.low %v695, %v703
    %v721 = vcombine.high %v695, %v703
    %v723 = vunpack.c.l.s4 1934713408
    %v724 = vunpack.c.0.s8 %v723
    %v725 = vlaneseq
    %v726 = vshrl.u32 %v725, 7
    %v727 = vsub.s32 %v724, %v726
    %v728 = vrot.slane %v720, %v727
    %v730 = vunpack.c.l.s4 1934713408
    %v731 = vunpack.c.0.s8 %v730
    %v732 = vlaneseq
    %v733 = vshrl.u32 %v732, 7
    %v734 = vsub.s32 %v731, %v733
    %v735 = vrot.slane %v721, %v734
    %v736 = vcombine.low %v712, %v728
    %v737 = vcombine.high %v712, %v728
    %v738 = vcombine.low %v719, %v735
    %v739 = vcombine.high %v719, %v735
    %v740 = vpack.c.bf16 %v668, %v668
    %v741 = vpack.c.bf16 %v669, %v669
    %v742 = vpack.c.bf16 %v670, %v670
    %v743 = vpack.c.bf16 %v671, %v671
    %v744 = vpack.c.bf16 %v736, %v736
    %v745 = vpack.c.bf16 %v737, %v737
    %v746 = vpack.c.bf16 %v738, %v738
    %v747 = vpack.c.bf16 %v739, %v739
    %748 = vrot.lane.b32.xlu0 %v122, 64
    %v749 = vpop.permute.xlu0 %748
    %750 = vrot.lane.b32.xlu0 %v125, 64
    %v751 = vpop.permute.xlu0 %750
    %752 = vrot.lane.b32.xlu0 %v433, 64
    %v753 = vpop.permute.xlu0 %752
    %754 = vrot.lane.b32.xlu0 %v435, 64
    %v755 = vpop.permute.xlu0 %754
    %756 = vrot.lane.b32.xlu0 %v437, 64
    %v757 = vpop.permute.xlu0 %756
    %758 = vrot.lane.b32.xlu0 %v439, 64
    %v759 = vpop.permute.xlu0 %758
    %760 = vrot.lane.b32.xlu0 %v441, 64
    %v761 = vpop.permute.xlu0 %760
    %762 = vrot.lane.b32.xlu0 %v443, 64
    %v763 = vpop.permute.xlu0 %762
    %v772 = vcombine.low %v749, %v757
    %v773 = vcombine.high %v749, %v757
    %v775 = vunpack.c.l.s4 1983009808
    %v776 = vunpack.c.0.s8 %v775
    %v777 = vlaneseq
    %v778 = vshrl.u32 %v777, 7
    %v779 = vsub.s32 %v776, %v778
    %v780 = vrot.slane %v772, %v779
    %v782 = vunpack.c.l.s4 1983009808
    %v783 = vunpack.c.0.s8 %v782
    %v784 = vlaneseq
    %v785 = vshrl.u32 %v784, 7
    %v786 = vsub.s32 %v783, %v785
    %v787 = vrot.slane %v773, %v786
    %v788 = vcombine.low %v753, %v761
    %v789 = vcombine.high %v753, %v761
    %v791 = vunpack.c.l.s4 1983009808
    %v792 = vunpack.c.0.s8 %v791
    %v793 = vlaneseq
    %v794 = vshrl.u32 %v793, 7
    %v795 = vsub.s32 %v792, %v794
    %v796 = vrot.slane %v788, %v795
    %v798 = vunpack.c.l.s4 1983009808
    %v799 = vunpack.c.0.s8 %v798
    %v800 = vlaneseq
    %v801 = vshrl.u32 %v800, 7
    %v802 = vsub.s32 %v799, %v801
    %v803 = vrot.slane %v789, %v802
    %v804 = vcombine.low %v780, %v796
    %v805 = vcombine.high %v780, %v796
    %v807 = vunpack.c.l.s4 1934713408
    %v808 = vunpack.c.0.s8 %v807
    %v809 = vlaneseq
    %v810 = vshrl.u32 %v809, 7
    %v811 = vsub.s32 %v808, %v810
    %v812 = vrot.slane %v804, %v811
    %v814 = vunpack.c.l.s4 1934713408
    %v815 = vunpack.c.0.s8 %v814
    %v816 = vlaneseq
    %v817 = vshrl.u32 %v816, 7
    %v818 = vsub.s32 %v815, %v817
    %v819 = vrot.slane %v805, %v818
    %v820 = vcombine.low %v787, %v803
    %v821 = vcombine.high %v787, %v803
    %v823 = vunpack.c.l.s4 1934713408
    %v824 = vunpack.c.0.s8 %v823
    %v825 = vlaneseq
    %v826 = vshrl.u32 %v825, 7
    %v827 = vsub.s32 %v824, %v826
    %v828 = vrot.slane %v820, %v827
    %v830 = vunpack.c.l.s4 1934713408
    %v831 = vunpack.c.0.s8 %v830
    %v832 = vlaneseq
    %v833 = vshrl.u32 %v832, 7
    %v834 = vsub.s32 %v831, %v833
    %v835 = vrot.slane %v821, %v834
    %v836 = vcombine.high %v812, 0.0
    %v837 = vcombine.high %v819, 0.0
    %v838 = vcombine.high %v828, 0.0
    %v839 = vcombine.high %v835, 0.0
    %v840 = vcombine.low %v751, %v759
    %v841 = vcombine.high %v751, %v759
    %v843 = vunpack.c.l.s4 1983009808
    %v844 = vunpack.c.0.s8 %v843
    %v845 = vlaneseq
    %v846 = vshrl.u32 %v845, 7
    %v847 = vsub.s32 %v844, %v846
    %v848 = vrot.slane %v840, %v847
    %v850 = vunpack.c.l.s4 1983009808
    %v851 = vunpack.c.0.s8 %v850
    %v852 = vlaneseq
    %v853 = vshrl.u32 %v852, 7
    %v854 = vsub.s32 %v851, %v853
    %v855 = vrot.slane %v841, %v854
    %v856 = vcombine.low %v755, %v763
    %v857 = vcombine.high %v755, %v763
    %v859 = vunpack.c.l.s4 1983009808
    %v860 = vunpack.c.0.s8 %v859
    %v861 = vlaneseq
    %v862 = vshrl.u32 %v861, 7
    %v863 = vsub.s32 %v860, %v862
    %v864 = vrot.slane %v856, %v863
    %v866 = vunpack.c.l.s4 1983009808
    %v867 = vunpack.c.0.s8 %v866
    %v868 = vlaneseq
    %v869 = vshrl.u32 %v868, 7
    %v870 = vsub.s32 %v867, %v869
    %v871 = vrot.slane %v857, %v870
    %v872 = vcombine.low %v848, %v864
    %v873 = vcombine.high %v848, %v864
    %v875 = vunpack.c.l.s4 1934713408
    %v876 = vunpack.c.0.s8 %v875
    %v877 = vlaneseq
    %v878 = vshrl.u32 %v877, 7
    %v879 = vsub.s32 %v876, %v878
    %v880 = vrot.slane %v872, %v879
    %v882 = vunpack.c.l.s4 1934713408
    %v883 = vunpack.c.0.s8 %v882
    %v884 = vlaneseq
    %v885 = vshrl.u32 %v884, 7
    %v886 = vsub.s32 %v883, %v885
    %v887 = vrot.slane %v873, %v886
    %v888 = vcombine.low %v855, %v871
    %v889 = vcombine.high %v855, %v871
    %v891 = vunpack.c.l.s4 1934713408
    %v892 = vunpack.c.0.s8 %v891
    %v893 = vlaneseq
    %v894 = vshrl.u32 %v893, 7
    %v895 = vsub.s32 %v892, %v894
    %v896 = vrot.slane %v888, %v895
    %v898 = vunpack.c.l.s4 1934713408
    %v899 = vunpack.c.0.s8 %v898
    %v900 = vlaneseq
    %v901 = vshrl.u32 %v900, 7
    %v902 = vsub.s32 %v899, %v901
    %v903 = vrot.slane %v889, %v902
    %v904 = vcombine.high %v880, 0.0
    %v905 = vcombine.high %v887, 0.0
    %v906 = vcombine.high %v896, 0.0
    %v907 = vcombine.high %v903, 0.0
    %v908 = vcombine.low %v812, %v819
    %v910 = vunpack.c.l.s4 1983009808
    %v911 = vunpack.c.0.s8 %v910
    %v912 = vlaneseq
    %v913 = vshrl.u32 %v912, 7
    %v914 = vsub.s32 %v911, %v913
    %v915 = vrot.slane %v908, %v914
    %v916 = vcombine.low %v836, %v837
    %v918 = vunpack.c.l.s4 1983009808
    %v919 = vunpack.c.0.s8 %v918
    %v920 = vlaneseq
    %v921 = vshrl.u32 %v920, 7
    %v922 = vsub.s32 %v919, %v921
    %v923 = vrot.slane %v916, %v922
    %v924 = vcombine.low %v828, %v835
    %v926 = vunpack.c.l.s4 1983009808
    %v927 = vunpack.c.0.s8 %v926
    %v928 = vlaneseq
    %v929 = vshrl.u32 %v928, 7
    %v930 = vsub.s32 %v927, %v929
    %v931 = vrot.slane %v924, %v930
    %v932 = vcombine.low %v838, %v839
    %v934 = vunpack.c.l.s4 1983009808
    %v935 = vunpack.c.0.s8 %v934
    %v936 = vlaneseq
    %v937 = vshrl.u32 %v936, 7
    %v938 = vsub.s32 %v935, %v937
    %v939 = vrot.slane %v932, %v938
    %v940 = vcombine.low %v915, %v923
    %v941 = vcombine.high %v915, %v923
    %v943 = vunpack.c.l.s4 1934713408
    %v944 = vunpack.c.0.s8 %v943
    %v945 = vlaneseq
    %v946 = vshrl.u32 %v945, 7
    %v947 = vsub.s32 %v944, %v946
    %v948 = vrot.slane %v940, %v947
    %v950 = vunpack.c.l.s4 1934713408
    %v951 = vunpack.c.0.s8 %v950
    %v952 = vlaneseq
    %v953 = vshrl.u32 %v952, 7
    %v954 = vsub.s32 %v951, %v953
    %v955 = vrot.slane %v941, %v954
    %v956 = vcombine.low %v931, %v939
    %v957 = vcombine.high %v931, %v939
    %v959 = vunpack.c.l.s4 1934713408
    %v960 = vunpack.c.0.s8 %v959
    %v961 = vlaneseq
    %v962 = vshrl.u32 %v961, 7
    %v963 = vsub.s32 %v960, %v962
    %v964 = vrot.slane %v956, %v963
    %v966 = vunpack.c.l.s4 1934713408
    %v967 = vunpack.c.0.s8 %v966
    %v968 = vlaneseq
    %v969 = vshrl.u32 %v968, 7
    %v970 = vsub.s32 %v967, %v969
    %v971 = vrot.slane %v957, %v970
    %v972 = vcombine.low %v948, %v964
    %v973 = vcombine.high %v948, %v964
    %v974 = vcombine.low %v955, %v971
    %v975 = vcombine.high %v955, %v971
    %v976 = vcombine.low %v880, %v887
    %v978 = vunpack.c.l.s4 1983009808
    %v979 = vunpack.c.0.s8 %v978
    %v980 = vlaneseq
    %v981 = vshrl.u32 %v980, 7
    %v982 = vsub.s32 %v979, %v981
    %v983 = vrot.slane %v976, %v982
    %v984 = vcombine.low %v904, %v905
    %v986 = vunpack.c.l.s4 1983009808
    %v987 = vunpack.c.0.s8 %v986
    %v988 = vlaneseq
    %v989 = vshrl.u32 %v988, 7
    %v990 = vsub.s32 %v987, %v989
    %v991 = vrot.slane %v984, %v990
    %v992 = vcombine.low %v896, %v903
    %v994 = vunpack.c.l.s4 1983009808
    %v995 = vunpack.c.0.s8 %v994
    %v996 = vlaneseq
    %v997 = vshrl.u32 %v996, 7
    %v998 = vsub.s32 %v995, %v997
    %v999 = vrot.slane %v992, %v998
    %v1000 = vcombine.low %v906, %v907
    %v1002 = vunpack.c.l.s4 1983009808
    %v1003 = vunpack.c.0.s8 %v1002
    %v1004 = vlaneseq
    %v1005 = vshrl.u32 %v1004, 7
    %v1006 = vsub.s32 %v1003, %v1005
    %v1007 = vrot.slane %v1000, %v1006
    %v1008 = vcombine.low %v983, %v991
    %v1009 = vcombine.high %v983, %v991
    %v1011 = vunpack.c.l.s4 1934713408
    %v1012 = vunpack.c.0.s8 %v1011
    %v1013 = vlaneseq
    %v1014 = vshrl.u32 %v1013, 7
    %v1015 = vsub.s32 %v1012, %v1014
    %v1016 = vrot.slane %v1008, %v1015
    %v1018 = vunpack.c.l.s4 1934713408
    %v1019 = vunpack.c.0.s8 %v1018
    %v1020 = vlaneseq
    %v1021 = vshrl.u32 %v1020, 7
    %v1022 = vsub.s32 %v1019, %v1021
    %v1023 = vrot.slane %v1009, %v1022
    %v1024 = vcombine.low %v999, %v1007
    %v1025 = vcombine.high %v999, %v1007
    %v1027 = vunpack.c.l.s4 1934713408
    %v1028 = vunpack.c.0.s8 %v1027
    %v1029 = vlaneseq
    %v1030 = vshrl.u32 %v1029, 7
    %v1031 = vsub.s32 %v1028, %v1030
    %v1032 = vrot.slane %v1024, %v1031
    %v1034 = vunpack.c.l.s4 1934713408
    %v1035 = vunpack.c.0.s8 %v1034
    %v1036 = vlaneseq
    %v1037 = vshrl.u32 %v1036, 7
    %v1038 = vsub.s32 %v1035, %v1037
    %v1039 = vrot.slane %v1025, %v1038
    %v1040 = vcombine.low %v1016, %v1032
    %v1041 = vcombine.high %v1016, %v1032
    %v1042 = vcombine.low %v1023, %v1039
    %v1043 = vcombine.high %v1023, %v1039
    %v1044 = vpack.c.bf16 %v972, %v972
    %v1045 = vpack.c.bf16 %v973, %v973
    %v1046 = vpack.c.bf16 %v974, %v974
    %v1047 = vpack.c.bf16 %v975, %v975
    %v1048 = vpack.c.bf16 %v1040, %v1040
    %v1049 = vpack.c.bf16 %v1041, %v1041
    %v1050 = vpack.c.bf16 %v1042, %v1042
    %v1051 = vpack.c.bf16 %v1043, %v1043
    %v1052 = vlaneseq
    %v1053 = vshrl.u32 %v1052, 7
    %v1054 = vlaneseq
    %v1055 = vand.u32 %v1054, 127
    %vm1056 = vcmp.ge.s32.totalorder %v1053, %v1055
    %vm1057 = vcmask 64512
    %v1059 = vsel %vm1057, %v422, 0
    %v1062 = vsel %vm1057, %v740, 0
    %1064 = vmatprep.subr.bf16.mxu0 0
    %1065 = vmatpush1.bf16.xpose.msra.mxu0 0
    %1066 = vmatprep.subr.bf16.mxu0 0
    %1067 = vmatpush1.bf16.xpose.msra.mxu0 0
    %1068 = vmatprep.subr.bf16.mxu0 0
    %1069 = vmatpush1.bf16.xpose.msra.mxu0 0
    %1070 = vmatprep.subr.bf16.mxu0 0
    %1071 = vmatpush1.bf16.xpose.msra.mxu0 0
    %1072 = vmatprep.subr.bf16.mxu0 0
    %1073 = vmatpush1.bf16.xpose.msra.mxu0 0
    %1074 = vmatprep.subr.bf16.mxu0 0
    %1075 = vmatpush1.bf16.xpose.msra.mxu0 0
    %1076 = vmatprep.subr.bf16.mxu0 0
    %1077 = vmatpush1.bf16.xpose.msra.mxu0 0
    %1078 = vmatprep.subr.bf16.mxu0 0
    %1079 = vmatpush1.bf16.xpose.msra.mxu0 %v1062
    %1080 = vmatprep.subr.bf16.mxu0 0
    %1081 = vmatpush2.bf16.xpose.msra.mxu0 0
    %1082 = vmatprep.subr.bf16.mxu0 0
    %1083 = vmatpush2.bf16.xpose.msra.mxu0 0
    %1084 = vmatprep.subr.bf16.mxu0 0
    %1085 = vmatpush2.bf16.xpose.msra.mxu0 0
    %1086 = vmatprep.subr.bf16.mxu0 0
    %1087 = vmatpush2.bf16.xpose.msra.mxu0 0
    %1088 = vmatprep.subr.bf16.mxu0 0
    %1089 = vmatpush2.bf16.xpose.msra.mxu0 0
    %1090 = vmatprep.subr.bf16.mxu0 0
    %1091 = vmatpush2.bf16.xpose.msra.mxu0 0
    %1092 = vmatprep.subr.bf16.mxu0 0
    %1093 = vmatpush2.bf16.xpose.msra.mxu0 0
    %1094 = vmatprep.subr.bf16.mxu0 0
    %1095 = vmatpush2.bf16.xpose.msra.mxu0 0
    %1096 = vmatprep.mubr.bf16.mxu0 0
    %1097 = vmatmul.mubr.bf16.gmra.mxu0 %v1059
    %v1098 = vpop.f32.mrf.mxu0
    %v1099 = vadd.f32 0.0, %v1098
    %v1100 = vpop.f32.mrf.mxu0
    %v1101 = vpop.f32.mrf.mxu0
    %v1102 = vpop.f32.mrf.mxu0
    %1103 = vdwg.mxu0
    %v1105 = vsel %vm1057, %v423, 0
    %v1108 = vsel %vm1057, %v741, 0
    %1110 = vmatprep.subr.bf16.mxu0 0
    %1111 = vmatpush1.bf16.xpose.msra.mxu0 0
    %1112 = vmatprep.subr.bf16.mxu0 0
    %1113 = vmatpush1.bf16.xpose.msra.mxu0 0
    %1114 = vmatprep.subr.bf16.mxu0 0
    %1115 = vmatpush1.bf16.xpose.msra.mxu0 0
    %1116 = vmatprep.subr.bf16.mxu0 0
    %1117 = vmatpush1.bf16.xpose.msra.mxu0 0
    %1118 = vmatprep.subr.bf16.mxu0 0
    %1119 = vmatpush1.bf16.xpose.msra.mxu0 0
    %1120 = vmatprep.subr.bf16.mxu0 0
    %1121 = vmatpush1.bf16.xpose.msra.mxu0 0
    %1122 = vmatprep.subr.bf16.mxu0 0
    %1123 = vmatpush1.bf16.xpose.msra.mxu0 0
    %1124 = vmatprep.subr.bf16.mxu0 0
    %1125 = vmatpush1.bf16.xpose.msra.mxu0 %v1108
    %1126 = vmatprep.subr.bf16.mxu0 0
    %1127 = vmatpush2.bf16.xpose.msra.mxu0 0
    %1128 = vmatprep.subr.bf16.mxu0 0
    %1129 = vmatpush2.bf16.xpose.msra.mxu0 0
    %1130 = vmatprep.subr.bf16.mxu0 0
    %1131 = vmatpush2.bf16.xpose.msra.mxu0 0
    %1132 = vmatprep.subr.bf16.mxu0 0
    %1133 = vmatpush2.bf16.xpose.msra.mxu0 0
    %1134 = vmatprep.subr.bf16.mxu0 0
    %1135 = vmatpush2.bf16.xpose.msra.mxu0 0
    %1136 = vmatprep.subr.bf16.mxu0 0
    %1137 = vmatpush2.bf16.xpose.msra.mxu0 0
    %1138 = vmatprep.subr.bf16.mxu0 0
    %1139 = vmatpush2.bf16.xpose.msra.mxu0 0
    %1140 = vmatprep.subr.bf16.mxu0 0
    %1141 = vmatpush2.bf16.xpose.msra.mxu0 0
    %1142 = vmatprep.mubr.bf16.mxu0 0
    %1143 = vmatmul.mubr.bf16.gmra.mxu0 %v1105
    %v1144 = vpop.f32.mrf.mxu0
    %v1145 = vadd.f32 0.0, %v1144
    %v1146 = vpop.f32.mrf.mxu0
    %v1147 = vpop.f32.mrf.mxu0
    %v1148 = vpop.f32.mrf.mxu0
    %1149 = vdwg.mxu0
    %v1151 = vsel %vm1057, %v424, 0
    %v1154 = vsel %vm1057, %v742, 0
    %1156 = vmatprep.subr.bf16.mxu0 0
    %1157 = vmatpush1.bf16.xpose.msra.mxu0 0
    %1158 = vmatprep.subr.bf16.mxu0 0
    %1159 = vmatpush1.bf16.xpose.msra.mxu0 0
    %1160 = vmatprep.subr.bf16.mxu0 0
    %1161 = vmatpush1.bf16.xpose.msra.mxu0 0
    %1162 = vmatprep.subr.bf16.mxu0 0
    %1163 = vmatpush1.bf16.xpose.msra.mxu0 0
    %1164 = vmatprep.subr.bf16.mxu0 0
    %1165 = vmatpush1.bf16.xpose.msra.mxu0 0
    %1166 = vmatprep.subr.bf16.mxu0 0
    %1167 = vmatpush1.bf16.xpose.msra.mxu0 0
    %1168 = vmatprep.subr.bf16.mxu0 0
    %1169 = vmatpush1.bf16.xpose.msra.mxu0 0
    %1170 = vmatprep.subr.bf16.mxu0 0
    %1171 = vmatpush1.bf16.xpose.msra.mxu0 %v1154
    %1172 = vmatprep.subr.bf16.mxu0 0
    %1173 = vmatpush2.bf16.xpose.msra.mxu0 0
    %1174 = vmatprep.subr.bf16.mxu0 0
    %1175 = vmatpush2.bf16.xpose.msra.mxu0 0
    %1176 = vmatprep.subr.bf16.mxu0 0
    %1177 = vmatpush2.bf16.xpose.msra.mxu0 0
    %1178 = vmatprep.subr.bf16.mxu0 0
    %1179 = vmatpush2.bf16.xpose.msra.mxu0 0
    %1180 = vmatprep.subr.bf16.mxu0 0
    %1181 = vmatpush2.bf16.xpose.msra.mxu0 0
    %1182 = vmatprep.subr.bf16.mxu0 0
    %1183 = vmatpush2.bf16.xpose.msra.mxu0 0
    %1184 = vmatprep.subr.bf16.mxu0 0
    %1185 = vmatpush2.bf16.xpose.msra.mxu0 0
    %1186 = vmatprep.subr.bf16.mxu0 0
    %1187 = vmatpush2.bf16.xpose.msra.mxu0 0
    %1188 = vmatprep.mubr.bf16.mxu0 0
    %1189 = vmatmul.mubr.bf16.gmra.mxu0 %v1151
    %v1190 = vpop.f32.mrf.mxu0
    %v1191 = vadd.f32 0.0, %v1190
    %v1192 = vpop.f32.mrf.mxu0
    %v1193 = vpop.f32.mrf.mxu0
    %v1194 = vpop.f32.mrf.mxu0
    %1195 = vdwg.mxu0
    %v1197 = vsel %vm1057, %v425, 0
    %v1200 = vsel %vm1057, %v743, 0
    %1202 = vmatprep.subr.bf16.mxu0 0
    %1203 = vmatpush1.bf16.xpose.msra.mxu0 0
    %1204 = vmatprep.subr.bf16.mxu0 0
    %1205 = vmatpush1.bf16.xpose.msra.mxu0 0
    %1206 = vmatprep.subr.bf16.mxu0 0
    %1207 = vmatpush1.bf16.xpose.msra.mxu0 0
    %1208 = vmatprep.subr.bf16.mxu0 0
    %1209 = vmatpush1.bf16.xpose.msra.mxu0 0
    %1210 = vmatprep.subr.bf16.mxu0 0
    %1211 = vmatpush1.bf16.xpose.msra.mxu0 0
    %1212 = vmatprep.subr.bf16.mxu0 0
    %1213 = vmatpush1.bf16.xpose.msra.mxu0 0
    %1214 = vmatprep.subr.bf16.mxu0 0
    %1215 = vmatpush1.bf16.xpose.msra.mxu0 0
    %1216 = vmatprep.subr.bf16.mxu0 0
    %1217 = vmatpush1.bf16.xpose.msra.mxu0 %v1200
    %1218 = vmatprep.subr.bf16.mxu0 0
    %1219 = vmatpush2.bf16.xpose.msra.mxu0 0
    %1220 = vmatprep.subr.bf16.mxu0 0
    %1221 = vmatpush2.bf16.xpose.msra.mxu0 0
    %1222 = vmatprep.subr.bf16.mxu0 0
    %1223 = vmatpush2.bf16.xpose.msra.mxu0 0
    %1224 = vmatprep.subr.bf16.mxu0 0
    %1225 = vmatpush2.bf16.xpose.msra.mxu0 0
    %1226 = vmatprep.subr.bf16.mxu0 0
    %1227 = vmatpush2.bf16.xpose.msra.mxu0 0
    %1228 = vmatprep.subr.bf16.mxu0 0
    %1229 = vmatpush2.bf16.xpose.msra.mxu0 0
    %1230 = vmatprep.subr.bf16.mxu0 0
    %1231 = vmatpush2.bf16.xpose.msra.mxu0 0
    %1232 = vmatprep.subr.bf16.mxu0 0
    %1233 = vmatpush2.bf16.xpose.msra.mxu0 0
    %1234 = vmatprep.mubr.bf16.mxu0 0
    %1235 = vmatmul.mubr.bf16.gmra.mxu0 %v1197
    %v1236 = vpop.f32.mrf.mxu0
    %v1237 = vadd.f32 0.0, %v1236
    %v1238 = vpop.f32.mrf.mxu0
    %v1239 = vpop.f32.mrf.mxu0
    %v1240 = vpop.f32.mrf.mxu0
    %1241 = vdwg.mxu0
    %v1243 = vsel %vm1057, %v426, 0
    %v1246 = vsel %vm1057, %v744, 0
    %1248 = vmatprep.subr.bf16.mxu0 0
    %1249 = vmatpush1.bf16.xpose.msra.mxu0 0
    %1250 = vmatprep.subr.bf16.mxu0 0
    %1251 = vmatpush1.bf16.xpose.msra.mxu0 0
    %1252 = vmatprep.subr.bf16.mxu0 0
    %1253 = vmatpush1.bf16.xpose.msra.mxu0 0
    %1254 = vmatprep.subr.bf16.mxu0 0
    %1255 = vmatpush1.bf16.xpose.msra.mxu0 0
    %1256 = vmatprep.subr.bf16.mxu0 0
    %1257 = vmatpush1.bf16.xpose.msra.mxu0 0
    %1258 = vmatprep.subr.bf16.mxu0 0
    %1259 = vmatpush1.bf16.xpose.msra.mxu0 0
    %1260 = vmatprep.subr.bf16.mxu0 0
    %1261 = vmatpush1.bf16.xpose.msra.mxu0 0
    %1262 = vmatprep.subr.bf16.mxu0 0
    %1263 = vmatpush1.bf16.xpose.msra.mxu0 %v1246
    %1264 = vmatprep.subr.bf16.mxu0 0
    %1265 = vmatpush2.bf16.xpose.msra.mxu0 0
    %1266 = vmatprep.subr.bf16.mxu0 0
    %1267 = vmatpush2.bf16.xpose.msra.mxu0 0
    %1268 = vmatprep.subr.bf16.mxu0 0
    %1269 = vmatpush2.bf16.xpose.msra.mxu0 0
    %1270 = vmatprep.subr.bf16.mxu0 0
    %1271 = vmatpush2.bf16.xpose.msra.mxu0 0
    %1272 = vmatprep.subr.bf16.mxu0 0
    %1273 = vmatpush2.bf16.xpose.msra.mxu0 0
    %1274 = vmatprep.subr.bf16.mxu0 0
    %1275 = vmatpush2.bf16.xpose.msra.mxu0 0
    %1276 = vmatprep.subr.bf16.mxu0 0
    %1277 = vmatpush2.bf16.xpose.msra.mxu0 0
    %1278 = vmatprep.subr.bf16.mxu0 0
    %1279 = vmatpush2.bf16.xpose.msra.mxu0 0
    %1280 = vmatprep.mubr.bf16.mxu0 0
    %1281 = vmatmul.mubr.bf16.gmra.mxu0 %v1243
    %v1282 = vpop.f32.mrf.mxu0
    %v1283 = vadd.f32 0.0, %v1282
    %v1284 = vpop.f32.mrf.mxu0
    %v1285 = vpop.f32.mrf.mxu0
    %v1286 = vpop.f32.mrf.mxu0
    %1287 = vdwg.mxu0
    %v1289 = vsel %vm1057, %v427, 0
    %v1292 = vsel %vm1057, %v745, 0
    %1294 = vmatprep.subr.bf16.mxu0 0
    %1295 = vmatpush1.bf16.xpose.msra.mxu0 0
    %1296 = vmatprep.subr.bf16.mxu0 0
    %1297 = vmatpush1.bf16.xpose.msra.mxu0 0
    %1298 = vmatprep.subr.bf16.mxu0 0
    %1299 = vmatpush1.bf16.xpose.msra.mxu0 0
    %1300 = vmatprep.subr.bf16.mxu0 0
    %1301 = vmatpush1.bf16.xpose.msra.mxu0 0
    %1302 = vmatprep.subr.bf16.mxu0 0
    %1303 = vmatpush1.bf16.xpose.msra.mxu0 0
    %1304 = vmatprep.subr.bf16.mxu0 0
    %1305 = vmatpush1.bf16.xpose.msra.mxu0 0
    %1306 = vmatprep.subr.bf16.mxu0 0
    %1307 = vmatpush1.bf16.xpose.msra.mxu0 0
    %1308 = vmatprep.subr.bf16.mxu0 0
    %1309 = vmatpush1.bf16.xpose.msra.mxu0 %v1292
    %1310 = vmatprep.subr.bf16.mxu0 0
    %1311 = vmatpush2.bf16.xpose.msra.mxu0 0
    %1312 = vmatprep.subr.bf16.mxu0 0
    %1313 = vmatpush2.bf16.xpose.msra.mxu0 0
    %1314 = vmatprep.subr.bf16.mxu0 0
    %1315 = vmatpush2.bf16.xpose.msra.mxu0 0
    %1316 = vmatprep.subr.bf16.mxu0 0
    %1317 = vmatpush2.bf16.xpose.msra.mxu0 0
    %1318 = vmatprep.subr.bf16.mxu0 0
    %1319 = vmatpush2.bf16.xpose.msra.mxu0 0
    %1320 = vmatprep.subr.bf16.mxu0 0
    %1321 = vmatpush2.bf16.xpose.msra.mxu0 0
    %1322 = vmatprep.subr.bf16.mxu0 0
    %1323 = vmatpush2.bf16.xpose.msra.mxu0 0
    %1324 = vmatprep.subr.bf16.mxu0 0
    %1325 = vmatpush2.bf16.xpose.msra.mxu0 0
    %1326 = vmatprep.mubr.bf16.mxu0 0
    %1327 = vmatmul.mubr.bf16.gmra.mxu0 %v1289
    %v1328 = vpop.f32.mrf.mxu0
    %v1329 = vadd.f32 0.0, %v1328
    %v1330 = vpop.f32.mrf.mxu0
    %v1331 = vpop.f32.mrf.mxu0
    %v1332 = vpop.f32.mrf.mxu0
    %1333 = vdwg.mxu0
    %v1335 = vsel %vm1057, %v428, 0
    %v1338 = vsel %vm1057, %v746, 0
    %1340 = vmatprep.subr.bf16.mxu0 0
    %1341 = vmatpush1.bf16.xpose.msra.mxu0 0
    %1342 = vmatprep.subr.bf16.mxu0 0
    %1343 = vmatpush1.bf16.xpose.msra.mxu0 0
    %1344 = vmatprep.subr.bf16.mxu0 0
    %1345 = vmatpush1.bf16.xpose.msra.mxu0 0
    %1346 = vmatprep.subr.bf16.mxu0 0
    %1347 = vmatpush1.bf16.xpose.msra.mxu0 0
    %1348 = vmatprep.subr.bf16.mxu0 0
    %1349 = vmatpush1.bf16.xpose.msra.mxu0 0
    %1350 = vmatprep.subr.bf16.mxu0 0
    %1351 = vmatpush1.bf16.xpose.msra.mxu0 0
    %1352 = vmatprep.subr.bf16.mxu0 0
    %1353 = vmatpush1.bf16.xpose.msra.mxu0 0
    %1354 = vmatprep.subr.bf16.mxu0 0
    %1355 = vmatpush1.bf16.xpose.msra.mxu0 %v1338
    %1356 = vmatprep.subr.bf16.mxu0 0
    %1357 = vmatpush2.bf16.xpose.msra.mxu0 0
    %1358 = vmatprep.subr.bf16.mxu0 0
    %1359 = vmatpush2.bf16.xpose.msra.mxu0 0
    %1360 = vmatprep.subr.bf16.mxu0 0
    %1361 = vmatpush2.bf16.xpose.msra.mxu0 0
    %1362 = vmatprep.subr.bf16.mxu0 0
    %1363 = vmatpush2.bf16.xpose.msra.mxu0 0
    %1364 = vmatprep.subr.bf16.mxu0 0
    %1365 = vmatpush2.bf16.xpose.msra.mxu0 0
    %1366 = vmatprep.subr.bf16.mxu0 0
    %1367 = vmatpush2.bf16.xpose.msra.mxu0 0
    %1368 = vmatprep.subr.bf16.mxu0 0
    %1369 = vmatpush2.bf16.xpose.msra.mxu0 0
    %1370 = vmatprep.subr.bf16.mxu0 0
    %1371 = vmatpush2.bf16.xpose.msra.mxu0 0
    %1372 = vmatprep.mubr.bf16.mxu0 0
    %1373 = vmatmul.mubr.bf16.gmra.mxu0 %v1335
    %v1374 = vpop.f32.mrf.mxu0
    %v1375 = vadd.f32 0.0, %v1374
    %v1376 = vpop.f32.mrf.mxu0
    %v1377 = vpop.f32.mrf.mxu0
    %v1378 = vpop.f32.mrf.mxu0
    %1379 = vdwg.mxu0
    %v1381 = vsel %vm1057, %v429, 0
    %v1384 = vsel %vm1057, %v747, 0
    %1386 = vmatprep.subr.bf16.mxu0 0
    %1387 = vmatpush1.bf16.xpose.msra.mxu0 0
    %1388 = vmatprep.subr.bf16.mxu0 0
    %1389 = vmatpush1.bf16.xpose.msra.mxu0 0
    %1390 = vmatprep.subr.bf16.mxu0 0
    %1391 = vmatpush1.bf16.xpose.msra.mxu0 0
    %1392 = vmatprep.subr.bf16.mxu0 0
    %1393 = vmatpush1.bf16.xpose.msra.mxu0 0
    %1394 = vmatprep.subr.bf16.mxu0 0
    %1395 = vmatpush1.bf16.xpose.msra.mxu0 0
    %1396 = vmatprep.subr.bf16.mxu0 0
    %1397 = vmatpush1.bf16.xpose.msra.mxu0 0
    %1398 = vmatprep.subr.bf16.mxu0 0
    %1399 = vmatpush1.bf16.xpose.msra.mxu0 0
    %1400 = vmatprep.subr.bf16.mxu0 0
    %1401 = vmatpush1.bf16.xpose.msra.mxu0 %v1384
    %1402 = vmatprep.subr.bf16.mxu0 0
    %1403 = vmatpush2.bf16.xpose.msra.mxu0 0
    %1404 = vmatprep.subr.bf16.mxu0 0
    %1405 = vmatpush2.bf16.xpose.msra.mxu0 0
    %1406 = vmatprep.subr.bf16.mxu0 0
    %1407 = vmatpush2.bf16.xpose.msra.mxu0 0
    %1408 = vmatprep.subr.bf16.mxu0 0
    %1409 = vmatpush2.bf16.xpose.msra.mxu0 0
    %1410 = vmatprep.subr.bf16.mxu0 0
    %1411 = vmatpush2.bf16.xpose.msra.mxu0 0
    %1412 = vmatprep.subr.bf16.mxu0 0
    %1413 = vmatpush2.bf16.xpose.msra.mxu0 0
    %1414 = vmatprep.subr.bf16.mxu0 0
    %1415 = vmatpush2.bf16.xpose.msra.mxu0 0
    %1416 = vmatprep.subr.bf16.mxu0 0
    %1417 = vmatpush2.bf16.xpose.msra.mxu0 0
    %1418 = vmatprep.mubr.bf16.mxu0 0
    %1419 = vmatmul.mubr.bf16.gmra.mxu0 %v1381
    %v1420 = vpop.f32.mrf.mxu0
    %v1421 = vadd.f32 0.0, %v1420
    %v1422 = vpop.f32.mrf.mxu0
    %v1423 = vpop.f32.mrf.mxu0
    %v1424 = vpop.f32.mrf.mxu0
    %1425 = vdwg.mxu0
    %v1426 = vsel %vm1056, 1, 0
    %vm1427 = vcmp.eq.s32.totalorder %v1426, 1
    %v1428 = vsel %vm1427, %v1099, -inf
    %v1429 = vsel %vm1427, %v1145, -inf
    %v1430 = vsel %vm1427, %v1191, -inf
    %v1431 = vsel %vm1427, %v1237, -inf
    %v1432 = vsel %vm1427, %v1283, -inf
    %v1433 = vsel %vm1427, %v1329, -inf
    %v1434 = vsel %vm1427, %v1375, -inf
    %v1435 = vsel %vm1427, %v1421, -inf
    %v1436 = vsel %vm1057, %v1428, -inf
    %1437 = vmax.xlane.f32.xlu0 %v1436
    %v1438 = vpop.xlane.xlu0 %1437
    %v1439 = vsel %vm1057, %v1429, -inf
    %1440 = vmax.xlane.f32.xlu0 %v1439
    %v1441 = vpop.xlane.xlu0 %1440
    %v1442 = vsel %vm1057, %v1430, -inf
    %1443 = vmax.xlane.f32.xlu0 %v1442
    %v1444 = vpop.xlane.xlu0 %1443
    %v1445 = vsel %vm1057, %v1431, -inf
    %1446 = vmax.xlane.f32.xlu0 %v1445
    %v1447 = vpop.xlane.xlu0 %1446
    %v1448 = vsel %vm1057, %v1432, -inf
    %1449 = vmax.xlane.f32.xlu0 %v1448
    %v1450 = vpop.xlane.xlu0 %1449
    %v1451 = vsel %vm1057, %v1433, -inf
    %1452 = vmax.xlane.f32.xlu0 %v1451
    %v1453 = vpop.xlane.xlu0 %1452
    %v1454 = vsel %vm1057, %v1434, -inf
    %1455 = vmax.xlane.f32.xlu0 %v1454
    %v1456 = vpop.xlane.xlu0 %1455
    %v1457 = vsel %vm1057, %v1435, -inf
    %1458 = vmax.xlane.f32.xlu0 %v1457
    %v1459 = vpop.xlane.xlu0 %1458
    %v1460 = vsub.f32 %v1428, %v1438
    %v1461 = vsub.f32 %v1429, %v1441
    %v1462 = vsub.f32 %v1430, %v1444
    %v1463 = vsub.f32 %v1431, %v1447
    %v1464 = vsub.f32 %v1432, %v1450
    %v1465 = vsub.f32 %v1433, %v1453
    %v1466 = vsub.f32 %v1434, %v1456
    %v1467 = vsub.f32 %v1435, %v1459
    %v1468 = vmul.f32 %v1460, 1.442695
    %v1469 = vpow.pop %v1468
    %v1470 = vmul.f32 %v1461, 1.442695
    %v1471 = vpow.pop %v1470
    %v1472 = vmul.f32 %v1462, 1.442695
    %v1473 = vpow.pop %v1472
    %v1474 = vmul.f32 %v1463, 1.442695
    %v1475 = vpow.pop %v1474
    %v1476 = vmul.f32 %v1464, 1.442695
    %v1477 = vpow.pop %v1476
    %v1478 = vmul.f32 %v1465, 1.442695
    %v1479 = vpow.pop %v1478
    %v1480 = vmul.f32 %v1466, 1.442695
    %v1481 = vpow.pop %v1480
    %v1482 = vmul.f32 %v1467, 1.442695
    %v1483 = vpow.pop %v1482
    %v1484 = vsel %vm1057, %v1469, 0.0
    %1485 = vadd.xlane.f32.xlu0 %v1484
    %v1486 = vpop.xlane.xlu0 %1485
    %v1487 = vsel %vm1057, %v1471, 0.0
    %1488 = vadd.xlane.f32.xlu0 %v1487
    %v1489 = vpop.xlane.xlu0 %1488
    %v1490 = vsel %vm1057, %v1473, 0.0
    %1491 = vadd.xlane.f32.xlu0 %v1490
    %v1492 = vpop.xlane.xlu0 %1491
    %v1493 = vsel %vm1057, %v1475, 0.0
    %1494 = vadd.xlane.f32.xlu0 %v1493
    %v1495 = vpop.xlane.xlu0 %1494
    %v1496 = vsel %vm1057, %v1477, 0.0
    %1497 = vadd.xlane.f32.xlu0 %v1496
    %v1498 = vpop.xlane.xlu0 %1497
    %v1499 = vsel %vm1057, %v1479, 0.0
    %1500 = vadd.xlane.f32.xlu0 %v1499
    %v1501 = vpop.xlane.xlu0 %1500
    %v1502 = vsel %vm1057, %v1481, 0.0
    %1503 = vadd.xlane.f32.xlu0 %v1502
    %v1504 = vpop.xlane.xlu0 %1503
    %v1505 = vsel %vm1057, %v1483, 0.0
    %1506 = vadd.xlane.f32.xlu0 %v1505
    %v1507 = vpop.xlane.xlu0 %1506
    %v1508 = vrcp.pop %v1486
    %v1509 = vrcp.pop %v1489
    %v1510 = vrcp.pop %v1492
    %v1511 = vrcp.pop %v1495
    %v1512 = vrcp.pop %v1498
    %v1513 = vrcp.pop %v1501
    %v1514 = vrcp.pop %v1504
    %v1515 = vrcp.pop %v1507
    %v1516 = vmul.f32 %v1469, %v1508
    %v1517 = vmul.f32 %v1471, %v1509
    %v1518 = vmul.f32 %v1473, %v1510
    %v1519 = vmul.f32 %v1475, %v1511
    %v1520 = vmul.f32 %v1477, %v1512
    %v1521 = vmul.f32 %v1479, %v1513
    %v1522 = vmul.f32 %v1481, %v1514
    %v1523 = vmul.f32 %v1483, %v1515
    %v1524 = vpack.c.bf16 %v1516, %v1516
    %v1525 = vpack.c.bf16 %v1517, %v1517
    %v1526 = vpack.c.bf16 %v1518, %v1518
    %v1527 = vpack.c.bf16 %v1519, %v1519
    %v1528 = vpack.c.bf16 %v1520, %v1520
    %v1529 = vpack.c.bf16 %v1521, %v1521
    %v1530 = vpack.c.bf16 %v1522, %v1522
    %v1531 = vpack.c.bf16 %v1523, %v1523
    %v1533 = vsel %vm1057, %v1524, 0
    %vm1535 = vcmask 1043456
    %v1537 = vsel %vm1535, %v1044, 0
    %1539 = vmatprep.subr.bf16.mxu0 0
    %1540 = vmatpush1.bf16.msra.mxu0 0
    %1541 = vmatprep.subr.bf16.mxu0 0
    %1542 = vmatpush1.bf16.msra.mxu0 0
    %1543 = vmatprep.subr.bf16.mxu0 0
    %1544 = vmatpush1.bf16.msra.mxu0 0
    %1545 = vmatprep.subr.bf16.mxu0 0
    %1546 = vmatpush1.bf16.msra.mxu0 0
    %1547 = vmatprep.subr.bf16.mxu0 0
    %1548 = vmatpush1.bf16.msra.mxu0 0
    %1549 = vmatprep.subr.bf16.mxu0 0
    %1550 = vmatpush1.bf16.msra.mxu0 0
    %1551 = vmatprep.subr.bf16.mxu0 0
    %1552 = vmatpush1.bf16.msra.mxu0 0
    %1553 = vmatprep.subr.bf16.mxu0 0
    %1554 = vmatpush1.bf16.msra.mxu0 %v1537
    %1555 = vmatprep.subr.bf16.mxu0 0
    %1556 = vmatpush2.bf16.msra.mxu0 0
    %1557 = vmatprep.subr.bf16.mxu0 0
    %1558 = vmatpush2.bf16.msra.mxu0 0
    %1559 = vmatprep.subr.bf16.mxu0 0
    %1560 = vmatpush2.bf16.msra.mxu0 0
    %1561 = vmatprep.subr.bf16.mxu0 0
    %1562 = vmatpush2.bf16.msra.mxu0 0
    %1563 = vmatprep.subr.bf16.mxu0 0
    %1564 = vmatpush2.bf16.msra.mxu0 0
    %1565 = vmatprep.subr.bf16.mxu0 0
    %1566 = vmatpush2.bf16.msra.mxu0 0
    %1567 = vmatprep.subr.bf16.mxu0 0
    %1568 = vmatpush2.bf16.msra.mxu0 0
    %1569 = vmatprep.subr.bf16.mxu0 0
    %1570 = vmatpush2.bf16.msra.mxu0 0
    %1571 = vmatprep.mubr.bf16.mxu0 0
    %1572 = vmatmul.mubr.bf16.gmra.mxu0 %v1533
    %v1573 = vpop.f32.mrf.mxu0
    %v1574 = vadd.f32 0.0, %v1573
    %v1575 = vpop.f32.mrf.mxu0
    %v1576 = vpop.f32.mrf.mxu0
    %v1577 = vpop.f32.mrf.mxu0
    %1578 = vdwg.mxu0
    %v1580 = vsel %vm1057, %v1525, 0
    %v1583 = vsel %vm1535, %v1045, 0
    %1585 = vmatprep.subr.bf16.mxu0 0
    %1586 = vmatpush1.bf16.msra.mxu0 0
    %1587 = vmatprep.subr.bf16.mxu0 0
    %1588 = vmatpush1.bf16.msra.mxu0 0
    %1589 = vmatprep.subr.bf16.mxu0 0
    %1590 = vmatpush1.bf16.msra.mxu0 0
    %1591 = vmatprep.subr.bf16.mxu0 0
    %1592 = vmatpush1.bf16.msra.mxu0 0
    %1593 = vmatprep.subr.bf16.mxu0 0
    %1594 = vmatpush1.bf16.msra.mxu0 0
    %1595 = vmatprep.subr.bf16.mxu0 0
    %1596 = vmatpush1.bf16.msra.mxu0 0
    %1597 = vmatprep.subr.bf16.mxu0 0
    %1598 = vmatpush1.bf16.msra.mxu0 0
    %1599 = vmatprep.subr.bf16.mxu0 0
    %1600 = vmatpush1.bf16.msra.mxu0 %v1583
    %1601 = vmatprep.subr.bf16.mxu0 0
    %1602 = vmatpush2.bf16.msra.mxu0 0
    %1603 = vmatprep.subr.bf16.mxu0 0
    %1604 = vmatpush2.bf16.msra.mxu0 0
    %1605 = vmatprep.subr.bf16.mxu0 0
    %1606 = vmatpush2.bf16.msra.mxu0 0
    %1607 = vmatprep.subr.bf16.mxu0 0
    %1608 = vmatpush2.bf16.msra.mxu0 0
    %1609 = vmatprep.subr.bf16.mxu0 0
    %1610 = vmatpush2.bf16.msra.mxu0 0
    %1611 = vmatprep.subr.bf16.mxu0 0
    %1612 = vmatpush2.bf16.msra.mxu0 0
    %1613 = vmatprep.subr.bf16.mxu0 0
    %1614 = vmatpush2.bf16.msra.mxu0 0
    %1615 = vmatprep.subr.bf16.mxu0 0
    %1616 = vmatpush2.bf16.msra.mxu0 0
    %1617 = vmatprep.mubr.bf16.mxu0 0
    %1618 = vmatmul.mubr.bf16.gmra.mxu0 %v1580
    %v1619 = vpop.f32.mrf.mxu0
    %v1620 = vadd.f32 0.0, %v1619
    %v1621 = vpop.f32.mrf.mxu0
    %v1622 = vpop.f32.mrf.mxu0
    %v1623 = vpop.f32.mrf.mxu0
    %1624 = vdwg.mxu0
    %v1626 = vsel %vm1057, %v1526, 0
    %v1629 = vsel %vm1535, %v1046, 0
    %1631 = vmatprep.subr.bf16.mxu0 0
    %1632 = vmatpush1.bf16.msra.mxu0 0
    %1633 = vmatprep.subr.bf16.mxu0 0
    %1634 = vmatpush1.bf16.msra.mxu0 0
    %1635 = vmatprep.subr.bf16.mxu0 0
    %1636 = vmatpush1.bf16.msra.mxu0 0
    %1637 = vmatprep.subr.bf16.mxu0 0
    %1638 = vmatpush1.bf16.msra.mxu0 0
    %1639 = vmatprep.subr.bf16.mxu0 0
    %1640 = vmatpush1.bf16.msra.mxu0 0
    %1641 = vmatprep.subr.bf16.mxu0 0
    %1642 = vmatpush1.bf16.msra.mxu0 0
    %1643 = vmatprep.subr.bf16.mxu0 0
    %1644 = vmatpush1.bf16.msra.mxu0 0
    %1645 = vmatprep.subr.bf16.mxu0 0
    %1646 = vmatpush1.bf16.msra.mxu0 %v1629
    %1647 = vmatprep.subr.bf16.mxu0 0
    %1648 = vmatpush2.bf16.msra.mxu0 0
    %1649 = vmatprep.subr.bf16.mxu0 0
    %1650 = vmatpush2.bf16.msra.mxu0 0
    %1651 = vmatprep.subr.bf16.mxu0 0
    %1652 = vmatpush2.bf16.msra.mxu0 0
    %1653 = vmatprep.subr.bf16.mxu0 0
    %1654 = vmatpush2.bf16.msra.mxu0 0
    %1655 = vmatprep.subr.bf16.mxu0 0
    %1656 = vmatpush2.bf16.msra.mxu0 0
    %1657 = vmatprep.subr.bf16.mxu0 0
    %1658 = vmatpush2.bf16.msra.mxu0 0
    %1659 = vmatprep.subr.bf16.mxu0 0
    %1660 = vmatpush2.bf16.msra.mxu0 0
    %1661 = vmatprep.subr.bf16.mxu0 0
    %1662 = vmatpush2.bf16.msra.mxu0 0
    %1663 = vmatprep.mubr.bf16.mxu0 0
    %1664 = vmatmul.mubr.bf16.gmra.mxu0 %v1626
    %v1665 = vpop.f32.mrf.mxu0
    %v1666 = vadd.f32 0.0, %v1665
    %v1667 = vpop.f32.mrf.mxu0
    %v1668 = vpop.f32.mrf.mxu0
    %v1669 = vpop.f32.mrf.mxu0
    %1670 = vdwg.mxu0
    %v1672 = vsel %vm1057, %v1527, 0
    %v1675 = vsel %vm1535, %v1047, 0
    %1677 = vmatprep.subr.bf16.mxu0 0
    %1678 = vmatpush1.bf16.msra.mxu0 0
    %1679 = vmatprep.subr.bf16.mxu0 0
    %1680 = vmatpush1.bf16.msra.mxu0 0
    %1681 = vmatprep.subr.bf16.mxu0 0
    %1682 = vmatpush1.bf16.msra.mxu0 0
    %1683 = vmatprep.subr.bf16.mxu0 0
    %1684 = vmatpush1.bf16.msra.mxu0 0
    %1685 = vmatprep.subr.bf16.mxu0 0
    %1686 = vmatpush1.bf16.msra.mxu0 0
    %1687 = vmatprep.subr.bf16.mxu0 0
    %1688 = vmatpush1.bf16.msra.mxu0 0
    %1689 = vmatprep.subr.bf16.mxu0 0
    %1690 = vmatpush1.bf16.msra.mxu0 0
    %1691 = vmatprep.subr.bf16.mxu0 0
    %1692 = vmatpush1.bf16.msra.mxu0 %v1675
    %1693 = vmatprep.subr.bf16.mxu0 0
    %1694 = vmatpush2.bf16.msra.mxu0 0
    %1695 = vmatprep.subr.bf16.mxu0 0
    %1696 = vmatpush2.bf16.msra.mxu0 0
    %1697 = vmatprep.subr.bf16.mxu0 0
    %1698 = vmatpush2.bf16.msra.mxu0 0
    %1699 = vmatprep.subr.bf16.mxu0 0
    %1700 = vmatpush2.bf16.msra.mxu0 0
    %1701 = vmatprep.subr.bf16.mxu0 0
    %1702 = vmatpush2.bf16.msra.mxu0 0
    %1703 = vmatprep.subr.bf16.mxu0 0
    %1704 = vmatpush2.bf16.msra.mxu0 0
    %1705 = vmatprep.subr.bf16.mxu0 0
    %1706 = vmatpush2.bf16.msra.mxu0 0
    %1707 = vmatprep.subr.bf16.mxu0 0
    %1708 = vmatpush2.bf16.msra.mxu0 0
    %1709 = vmatprep.mubr.bf16.mxu0 0
    %1710 = vmatmul.mubr.bf16.gmra.mxu0 %v1672
    %v1711 = vpop.f32.mrf.mxu0
    %v1712 = vadd.f32 0.0, %v1711
    %v1713 = vpop.f32.mrf.mxu0
    %v1714 = vpop.f32.mrf.mxu0
    %v1715 = vpop.f32.mrf.mxu0
    %1716 = vdwg.mxu0
    %v1718 = vsel %vm1057, %v1528, 0
    %v1721 = vsel %vm1535, %v1048, 0
    %1723 = vmatprep.subr.bf16.mxu0 0
    %1724 = vmatpush1.bf16.msra.mxu0 0
    %1725 = vmatprep.subr.bf16.mxu0 0
    %1726 = vmatpush1.bf16.msra.mxu0 0
    %1727 = vmatprep.subr.bf16.mxu0 0
    %1728 = vmatpush1.bf16.msra.mxu0 0
    %1729 = vmatprep.subr.bf16.mxu0 0
    %1730 = vmatpush1.bf16.msra.mxu0 0
    %1731 = vmatprep.subr.bf16.mxu0 0
    %1732 = vmatpush1.bf16.msra.mxu0 0
    %1733 = vmatprep.subr.bf16.mxu0 0
    %1734 = vmatpush1.bf16.msra.mxu0 0
    %1735 = vmatprep.subr.bf16.mxu0 0
    %1736 = vmatpush1.bf16.msra.mxu0 0
    %1737 = vmatprep.subr.bf16.mxu0 0
    %1738 = vmatpush1.bf16.msra.mxu0 %v1721
    %1739 = vmatprep.subr.bf16.mxu0 0
    %1740 = vmatpush2.bf16.msra.mxu0 0
    %1741 = vmatprep.subr.bf16.mxu0 0
    %1742 = vmatpush2.bf16.msra.mxu0 0
    %1743 = vmatprep.subr.bf16.mxu0 0
    %1744 = vmatpush2.bf16.msra.mxu0 0
    %1745 = vmatprep.subr.bf16.mxu0 0
    %1746 = vmatpush2.bf16.msra.mxu0 0
    %1747 = vmatprep.subr.bf16.mxu0 0
    %1748 = vmatpush2.bf16.msra.mxu0 0
    %1749 = vmatprep.subr.bf16.mxu0 0
    %1750 = vmatpush2.bf16.msra.mxu0 0
    %1751 = vmatprep.subr.bf16.mxu0 0
    %1752 = vmatpush2.bf16.msra.mxu0 0
    %1753 = vmatprep.subr.bf16.mxu0 0
    %1754 = vmatpush2.bf16.msra.mxu0 0
    %1755 = vmatprep.mubr.bf16.mxu0 0
    %1756 = vmatmul.mubr.bf16.gmra.mxu0 %v1718
    %v1757 = vpop.f32.mrf.mxu0
    %v1758 = vadd.f32 0.0, %v1757
    %v1759 = vpop.f32.mrf.mxu0
    %v1760 = vpop.f32.mrf.mxu0
    %v1761 = vpop.f32.mrf.mxu0
    %1762 = vdwg.mxu0
    %v1764 = vsel %vm1057, %v1529, 0
    %v1767 = vsel %vm1535, %v1049, 0
    %1769 = vmatprep.subr.bf16.mxu0 0
    %1770 = vmatpush1.bf16.msra.mxu0 0
    %1771 = vmatprep.subr.bf16.mxu0 0
    %1772 = vmatpush1.bf16.msra.mxu0 0
    %1773 = vmatprep.subr.bf16.mxu0 0
    %1774 = vmatpush1.bf16.msra.mxu0 0
    %1775 = vmatprep.subr.bf16.mxu0 0
    %1776 = vmatpush1.bf16.msra.mxu0 0
    %1777 = vmatprep.subr.bf16.mxu0 0
    %1778 = vmatpush1.bf16.msra.mxu0 0
    %1779 = vmatprep.subr.bf16.mxu0 0
    %1780 = vmatpush1.bf16.msra.mxu0 0
    %1781 = vmatprep.subr.bf16.mxu0 0
    %1782 = vmatpush1.bf16.msra.mxu0 0
    %1783 = vmatprep.subr.bf16.mxu0 0
    %1784 = vmatpush1.bf16.msra.mxu0 %v1767
    %1785 = vmatprep.subr.bf16.mxu0 0
    %1786 = vmatpush2.bf16.msra.mxu0 0
    %1787 = vmatprep.subr.bf16.mxu0 0
    %1788 = vmatpush2.bf16.msra.mxu0 0
    %1789 = vmatprep.subr.bf16.mxu0 0
    %1790 = vmatpush2.bf16.msra.mxu0 0
    %1791 = vmatprep.subr.bf16.mxu0 0
    %1792 = vmatpush2.bf16.msra.mxu0 0
    %1793 = vmatprep.subr.bf16.mxu0 0
    %1794 = vmatpush2.bf16.msra.mxu0 0
    %1795 = vmatprep.subr.bf16.mxu0 0
    %1796 = vmatpush2.bf16.msra.mxu0 0
    %1797 = vmatprep.subr.bf16.mxu0 0
    %1798 = vmatpush2.bf16.msra.mxu0 0
    %1799 = vmatprep.subr.bf16.mxu0 0
    %1800 = vmatpush2.bf16.msra.mxu0 0
    %1801 = vmatprep.mubr.bf16.mxu0 0
    %1802 = vmatmul.mubr.bf16.gmra.mxu0 %v1764
    %v1803 = vpop.f32.mrf.mxu0
    %v1804 = vadd.f32 0.0, %v1803
    %v1805 = vpop.f32.mrf.mxu0
    %v1806 = vpop.f32.mrf.mxu0
    %v1807 = vpop.f32.mrf.mxu0
    %1808 = vdwg.mxu0
    %v1810 = vsel %vm1057, %v1530, 0
    %v1813 = vsel %vm1535, %v1050, 0
    %1815 = vmatprep.subr.bf16.mxu0 0
    %1816 = vmatpush1.bf16.msra.mxu0 0
    %1817 = vmatprep.subr.bf16.mxu0 0
    %1818 = vmatpush1.bf16.msra.mxu0 0
    %1819 = vmatprep.subr.bf16.mxu0 0
    %1820 = vmatpush1.bf16.msra.mxu0 0
    %1821 = vmatprep.subr.bf16.mxu0 0
    %1822 = vmatpush1.bf16.msra.mxu0 0
    %1823 = vmatprep.subr.bf16.mxu0 0
    %1824 = vmatpush1.bf16.msra.mxu0 0
    %1825 = vmatprep.subr.bf16.mxu0 0
    %1826 = vmatpush1.bf16.msra.mxu0 0
    %1827 = vmatprep.subr.bf16.mxu0 0
    %1828 = vmatpush1.bf16.msra.mxu0 0
    %1829 = vmatprep.subr.bf16.mxu0 0
    %1830 = vmatpush1.bf16.msra.mxu0 %v1813
    %1831 = vmatprep.subr.bf16.mxu0 0
    %1832 = vmatpush2.bf16.msra.mxu0 0
    %1833 = vmatprep.subr.bf16.mxu0 0
    %1834 = vmatpush2.bf16.msra.mxu0 0
    %1835 = vmatprep.subr.bf16.mxu0 0
    %1836 = vmatpush2.bf16.msra.mxu0 0
    %1837 = vmatprep.subr.bf16.mxu0 0
    %1838 = vmatpush2.bf16.msra.mxu0 0
    %1839 = vmatprep.subr.bf16.mxu0 0
    %1840 = vmatpush2.bf16.msra.mxu0 0
    %1841 = vmatprep.subr.bf16.mxu0 0
    %1842 = vmatpush2.bf16.msra.mxu0 0
    %1843 = vmatprep.subr.bf16.mxu0 0
    %1844 = vmatpush2.bf16.msra.mxu0 0
    %1845 = vmatprep.subr.bf16.mxu0 0
    %1846 = vmatpush2.bf16.msra.mxu0 0
    %1847 = vmatprep.mubr.bf16.mxu0 0
    %1848 = vmatmul.mubr.bf16.gmra.mxu0 %v1810
    %v1849 = vpop.f32.mrf.mxu0
    %v1850 = vadd.f32 0.0, %v1849
    %v1851 = vpop.f32.mrf.mxu0
    %v1852 = vpop.f32.mrf.mxu0
    %v1853 = vpop.f32.mrf.mxu0
    %1854 = vdwg.mxu0
    %v1856 = vsel %vm1057, %v1531, 0
    %v1859 = vsel %vm1535, %v1051, 0
    %1861 = vmatprep.subr.bf16.mxu0 0
    %1862 = vmatpush1.bf16.msra.mxu0 0
    %1863 = vmatprep.subr.bf16.mxu0 0
    %1864 = vmatpush1.bf16.msra.mxu0 0
    %1865 = vmatprep.subr.bf16.mxu0 0
    %1866 = vmatpush1.bf16.msra.mxu0 0
    %1867 = vmatprep.subr.bf16.mxu0 0
    %1868 = vmatpush1.bf16.msra.mxu0 0
    %1869 = vmatprep.subr.bf16.mxu0 0
    %1870 = vmatpush1.bf16.msra.mxu0 0
    %1871 = vmatprep.subr.bf16.mxu0 0
    %1872 = vmatpush1.bf16.msra.mxu0 0
    %1873 = vmatprep.subr.bf16.mxu0 0
    %1874 = vmatpush1.bf16.msra.mxu0 0
    %1875 = vmatprep.subr.bf16.mxu0 0
    %1876 = vmatpush1.bf16.msra.mxu0 %v1859
    %1877 = vmatprep.subr.bf16.mxu0 0
    %1878 = vmatpush2.bf16.msra.mxu0 0
    %1879 = vmatprep.subr.bf16.mxu0 0
    %1880 = vmatpush2.bf16.msra.mxu0 0
    %1881 = vmatprep.subr.bf16.mxu0 0
    %1882 = vmatpush2.bf16.msra.mxu0 0
    %1883 = vmatprep.subr.bf16.mxu0 0
    %1884 = vmatpush2.bf16.msra.mxu0 0
    %1885 = vmatprep.subr.bf16.mxu0 0
    %1886 = vmatpush2.bf16.msra.mxu0 0
    %1887 = vmatprep.subr.bf16.mxu0 0
    %1888 = vmatpush2.bf16.msra.mxu0 0
    %1889 = vmatprep.subr.bf16.mxu0 0
    %1890 = vmatpush2.bf16.msra.mxu0 0
    %1891 = vmatprep.subr.bf16.mxu0 0
    %1892 = vmatpush2.bf16.msra.mxu0 0
    %1893 = vmatprep.mubr.bf16.mxu0 0
    %1894 = vmatmul.mubr.bf16.gmra.mxu0 %v1856
    %v1895 = vpop.f32.mrf.mxu0
    %v1896 = vadd.f32 0.0, %v1895
    %v1897 = vpop.f32.mrf.mxu0
    %v1898 = vpop.f32.mrf.mxu0
    %v1899 = vpop.f32.mrf.mxu0
    %1900 = vdwg.mxu0
    %v1901 = vcombine.low %v1574, %v1666
    %v1902 = vcombine.high %v1574, %v1666
    %v1904 = vunpack.c.l.s4 1983009808
    %v1905 = vunpack.c.0.s8 %v1904
    %v1906 = vlaneseq
    %v1907 = vshrl.u32 %v1906, 7
    %v1908 = vsub.s32 %v1905, %v1907
    %v1909 = vrot.slane %v1901, %v1908
    %v1911 = vunpack.c.l.s4 1983009808
    %v1912 = vunpack.c.0.s8 %v1911
    %v1913 = vlaneseq
    %v1914 = vshrl.u32 %v1913, 7
    %v1915 = vsub.s32 %v1912, %v1914
    %v1916 = vrot.slane %v1902, %v1915
    %v1917 = vcombine.low %v1620, %v1712
    %v1918 = vcombine.high %v1620, %v1712
    %v1920 = vunpack.c.l.s4 1983009808
    %v1921 = vunpack.c.0.s8 %v1920
    %v1922 = vlaneseq
    %v1923 = vshrl.u32 %v1922, 7
    %v1924 = vsub.s32 %v1921, %v1923
    %v1925 = vrot.slane %v1917, %v1924
    %v1927 = vunpack.c.l.s4 1983009808
    %v1928 = vunpack.c.0.s8 %v1927
    %v1929 = vlaneseq
    %v1930 = vshrl.u32 %v1929, 7
    %v1931 = vsub.s32 %v1928, %v1930
    %v1932 = vrot.slane %v1918, %v1931
    %v1933 = vcombine.low %v1909, %v1925
    %v1934 = vcombine.high %v1909, %v1925
    %v1936 = vunpack.c.l.s4 1934713408
    %v1937 = vunpack.c.0.s8 %v1936
    %v1938 = vlaneseq
    %v1939 = vshrl.u32 %v1938, 7
    %v1940 = vsub.s32 %v1937, %v1939
    %v1941 = vrot.slane %v1933, %v1940
    %v1943 = vunpack.c.l.s4 1934713408
    %v1944 = vunpack.c.0.s8 %v1943
    %v1945 = vlaneseq
    %v1946 = vshrl.u32 %v1945, 7
    %v1947 = vsub.s32 %v1944, %v1946
    %v1948 = vrot.slane %v1934, %v1947
    %v1949 = vcombine.low %v1916, %v1932
    %v1950 = vcombine.high %v1916, %v1932
    %v1952 = vunpack.c.l.s4 1934713408
    %v1953 = vunpack.c.0.s8 %v1952
    %v1954 = vlaneseq
    %v1955 = vshrl.u32 %v1954, 7
    %v1956 = vsub.s32 %v1953, %v1955
    %v1957 = vrot.slane %v1949, %v1956
    %v1959 = vunpack.c.l.s4 1934713408
    %v1960 = vunpack.c.0.s8 %v1959
    %v1961 = vlaneseq
    %v1962 = vshrl.u32 %v1961, 7
    %v1963 = vsub.s32 %v1960, %v1962
    %v1964 = vrot.slane %v1950, %v1963
    %v1965 = vcombine.high %v1941, 0.0
    %v1966 = vcombine.high %v1948, 0.0
    %v1967 = vcombine.high %v1957, 0.0
    %v1968 = vcombine.high %v1964, 0.0
    %v1969 = vcombine.low %v1758, %v1850
    %v1970 = vcombine.high %v1758, %v1850
    %v1972 = vunpack.c.l.s4 1983009808
    %v1973 = vunpack.c.0.s8 %v1972
    %v1974 = vlaneseq
    %v1975 = vshrl.u32 %v1974, 7
    %v1976 = vsub.s32 %v1973, %v1975
    %v1977 = vrot.slane %v1969, %v1976
    %v1979 = vunpack.c.l.s4 1983009808
    %v1980 = vunpack.c.0.s8 %v1979
    %v1981 = vlaneseq
    %v1982 = vshrl.u32 %v1981, 7
    %v1983 = vsub.s32 %v1980, %v1982
    %v1984 = vrot.slane %v1970, %v1983
    %v1985 = vcombine.low %v1804, %v1896
    %v1986 = vcombine.high %v1804, %v1896
    %v1988 = vunpack.c.l.s4 1983009808
    %v1989 = vunpack.c.0.s8 %v1988
    %v1990 = vlaneseq
    %v1991 = vshrl.u32 %v1990, 7
    %v1992 = vsub.s32 %v1989, %v1991
    %v1993 = vrot.slane %v1985, %v1992
    %v1995 = vunpack.c.l.s4 1983009808
    %v1996 = vunpack.c.0.s8 %v1995
    %v1997 = vlaneseq
    %v1998 = vshrl.u32 %v1997, 7
    %v1999 = vsub.s32 %v1996, %v1998
    %v2000 = vrot.slane %v1986, %v1999
    %v2001 = vcombine.low %v1977, %v1993
    %v2002 = vcombine.high %v1977, %v1993
    %v2004 = vunpack.c.l.s4 1934713408
    %v2005 = vunpack.c.0.s8 %v2004
    %v2006 = vlaneseq
    %v2007 = vshrl.u32 %v2006, 7
    %v2008 = vsub.s32 %v2005, %v2007
    %v2009 = vrot.slane %v2001, %v2008
    %v2011 = vunpack.c.l.s4 1934713408
    %v2012 = vunpack.c.0.s8 %v2011
    %v2013 = vlaneseq
    %v2014 = vshrl.u32 %v2013, 7
    %v2015 = vsub.s32 %v2012, %v2014
    %v2016 = vrot.slane %v2002, %v2015
    %v2017 = vcombine.low %v1984, %v2000
    %v2018 = vcombine.high %v1984, %v2000
    %v2020 = vunpack.c.l.s4 1934713408
    %v2021 = vunpack.c.0.s8 %v2020
    %v2022 = vlaneseq
    %v2023 = vshrl.u32 %v2022, 7
    %v2024 = vsub.s32 %v2021, %v2023
    %v2025 = vrot.slane %v2017, %v2024
    %v2027 = vunpack.c.l.s4 1934713408
    %v2028 = vunpack.c.0.s8 %v2027
    %v2029 = vlaneseq
    %v2030 = vshrl.u32 %v2029, 7
    %v2031 = vsub.s32 %v2028, %v2030
    %v2032 = vrot.slane %v2018, %v2031
    %v2033 = vcombine.high %v2009, 0.0
    %v2034 = vcombine.high %v2016, 0.0
    %v2035 = vcombine.high %v2025, 0.0
    %v2036 = vcombine.high %v2032, 0.0
    %v2037 = vcombine.low %v1941, %v1948
    %v2039 = vunpack.c.l.s4 1983009808
    %v2040 = vunpack.c.0.s8 %v2039
    %v2041 = vlaneseq
    %v2042 = vshrl.u32 %v2041, 7
    %v2043 = vsub.s32 %v2040, %v2042
    %v2044 = vrot.slane %v2037, %v2043
    %v2045 = vcombine.low %v1965, %v1966
    %v2047 = vunpack.c.l.s4 1983009808
    %v2048 = vunpack.c.0.s8 %v2047
    %v2049 = vlaneseq
    %v2050 = vshrl.u32 %v2049, 7
    %v2051 = vsub.s32 %v2048, %v2050
    %v2052 = vrot.slane %v2045, %v2051
    %v2053 = vcombine.low %v1957, %v1964
    %v2055 = vunpack.c.l.s4 1983009808
    %v2056 = vunpack.c.0.s8 %v2055
    %v2057 = vlaneseq
    %v2058 = vshrl.u32 %v2057, 7
    %v2059 = vsub.s32 %v2056, %v2058
    %v2060 = vrot.slane %v2053, %v2059
    %v2061 = vcombine.low %v1967, %v1968
    %v2063 = vunpack.c.l.s4 1983009808
    %v2064 = vunpack.c.0.s8 %v2063
    %v2065 = vlaneseq
    %v2066 = vshrl.u32 %v2065, 7
    %v2067 = vsub.s32 %v2064, %v2066
    %v2068 = vrot.slane %v2061, %v2067
    %v2069 = vcombine.low %v2044, %v2052
    %v2070 = vcombine.high %v2044, %v2052
    %v2072 = vunpack.c.l.s4 1934713408
    %v2073 = vunpack.c.0.s8 %v2072
    %v2074 = vlaneseq
    %v2075 = vshrl.u32 %v2074, 7
    %v2076 = vsub.s32 %v2073, %v2075
    %v2077 = vrot.slane %v2069, %v2076
    %v2079 = vunpack.c.l.s4 1934713408
    %v2080 = vunpack.c.0.s8 %v2079
    %v2081 = vlaneseq
    %v2082 = vshrl.u32 %v2081, 7
    %v2083 = vsub.s32 %v2080, %v2082
    %v2084 = vrot.slane %v2070, %v2083
    %v2085 = vcombine.low %v2060, %v2068
    %v2086 = vcombine.high %v2060, %v2068
    %v2088 = vunpack.c.l.s4 1934713408
    %v2089 = vunpack.c.0.s8 %v2088
    %v2090 = vlaneseq
    %v2091 = vshrl.u32 %v2090, 7
    %v2092 = vsub.s32 %v2089, %v2091
    %v2093 = vrot.slane %v2085, %v2092
    %v2095 = vunpack.c.l.s4 1934713408
    %v2096 = vunpack.c.0.s8 %v2095
    %v2097 = vlaneseq
    %v2098 = vshrl.u32 %v2097, 7
    %v2099 = vsub.s32 %v2096, %v2098
    %v2100 = vrot.slane %v2086, %v2099
    %v2101 = vcombine.low %v2077, %v2093
    %v2102 = vcombine.high %v2077, %v2093
    %v2103 = vcombine.low %v2084, %v2100
    %v2104 = vcombine.high %v2084, %v2100
    %v2105 = vcombine.low %v2009, %v2016
    %v2107 = vunpack.c.l.s4 1983009808
    %v2108 = vunpack.c.0.s8 %v2107
    %v2109 = vlaneseq
    %v2110 = vshrl.u32 %v2109, 7
    %v2111 = vsub.s32 %v2108, %v2110
    %v2112 = vrot.slane %v2105, %v2111
    %v2113 = vcombine.low %v2033, %v2034
    %v2115 = vunpack.c.l.s4 1983009808
    %v2116 = vunpack.c.0.s8 %v2115
    %v2117 = vlaneseq
    %v2118 = vshrl.u32 %v2117, 7
    %v2119 = vsub.s32 %v2116, %v2118
    %v2120 = vrot.slane %v2113, %v2119
    %v2121 = vcombine.low %v2025, %v2032
    %v2123 = vunpack.c.l.s4 1983009808
    %v2124 = vunpack.c.0.s8 %v2123
    %v2125 = vlaneseq
    %v2126 = vshrl.u32 %v2125, 7
    %v2127 = vsub.s32 %v2124, %v2126
    %v2128 = vrot.slane %v2121, %v2127
    %v2129 = vcombine.low %v2035, %v2036
    %v2131 = vunpack.c.l.s4 1983009808
    %v2132 = vunpack.c.0.s8 %v2131
    %v2133 = vlaneseq
    %v2134 = vshrl.u32 %v2133, 7
    %v2135 = vsub.s32 %v2132, %v2134
    %v2136 = vrot.slane %v2129, %v2135
    %v2137 = vcombine.low %v2112, %v2120
    %v2138 = vcombine.high %v2112, %v2120
    %v2140 = vunpack.c.l.s4 1934713408
    %v2141 = vunpack.c.0.s8 %v2140
    %v2142 = vlaneseq
    %v2143 = vshrl.u32 %v2142, 7
    %v2144 = vsub.s32 %v2141, %v2143
    %v2145 = vrot.slane %v2137, %v2144
    %v2147 = vunpack.c.l.s4 1934713408
    %v2148 = vunpack.c.0.s8 %v2147
    %v2149 = vlaneseq
    %v2150 = vshrl.u32 %v2149, 7
    %v2151 = vsub.s32 %v2148, %v2150
    %v2152 = vrot.slane %v2138, %v2151
    %v2153 = vcombine.low %v2128, %v2136
    %v2154 = vcombine.high %v2128, %v2136
    %v2156 = vunpack.c.l.s4 1934713408
    %v2157 = vunpack.c.0.s8 %v2156
    %v2158 = vlaneseq
    %v2159 = vshrl.u32 %v2158, 7
    %v2160 = vsub.s32 %v2157, %v2159
    %v2161 = vrot.slane %v2153, %v2160
    %v2163 = vunpack.c.l.s4 1934713408
    %v2164 = vunpack.c.0.s8 %v2163
    %v2165 = vlaneseq
    %v2166 = vshrl.u32 %v2165, 7
    %v2167 = vsub.s32 %v2164, %v2166
    %v2168 = vrot.slane %v2154, %v2167
    %v2169 = vcombine.low %v2145, %v2161
    %v2170 = vcombine.high %v2145, %v2161
    %v2171 = vcombine.low %v2152, %v2168
    %v2172 = vcombine.high %v2152, %v2168
    %2175 = vrot.lane.b32.xlu0 %v2102, 8
    %v2176 = vpop.permute.xlu0 %2175
    %2177 = vrot.lane.b32.xlu0 %v2170, 8
    %v2178 = vpop.permute.xlu0 %2177
    %2183 = vrot.lane.b32.xlu0 %v2103, 16
    %v2184 = vpop.permute.xlu0 %2183
    %2185 = vrot.lane.b32.xlu0 %v2171, 16
    %v2186 = vpop.permute.xlu0 %2185
    %2191 = vrot.lane.b32.xlu0 %v2104, 24
    %v2192 = vpop.permute.xlu0 %2191
    %2193 = vrot.lane.b32.xlu0 %v2172, 24
    %v2194 = vpop.permute.xlu0 %2193
    %v2197 = vsel %vm1057, %v2101, %v2176
    %v2198 = vsel %vm1057, %v2169, %v2178
    %vm2199 = vcmask 130048
    %v2200 = vsel %vm2199, %v2197, %v2184
    %v2201 = vsel %vm2199, %v2198, %v2186
    %vm2202 = vcmask 195584
    %v2203 = vsel %vm2202, %v2200, %v2192
    %v2204 = vsel %vm2202, %v2201, %v2194
    %v2205 = vpack.c.bf16 %v2204, %v2203
    %v2206 = vld [vmem:[#allocation7] sm:$0xf]
    %v2207 = vld [vmem:[#allocation7 + $0x4] sm:$0xf]
    %v2208 = vld [vmem:[#allocation7 + $0x8] sm:$0xf]
    %v2209 = vld [vmem:[#allocation7 + $0xc] sm:$0xf]
    %v2210 = vld [vmem:[%s3] sm:$0x1]
    %v2212 = vlaneseq
    %v2213 = vshrl.u32 %v2212, 7
    %v2214 = vsub.s32 0, %v2213
    %v2215 = vrot.slane %v2210, %v2214
    %v2221 = vunpack.c.l.b16 %v2206
    %v2222 = vunpack.c.l.b16 %v2207
    %v2223 = vunpack.c.l.b16 %v2208
    %v2224 = vunpack.c.l.b16 %v2209
    %v2225 = vpack.c.b16 %v2222, %v2221
    %v2226 = vpack.c.b16 %v2224, %v2223
    %v2230 = vsel %vm83, %v2205, 0
    %2232 = vmatprep.subr.bf16.mxu0 0
    %2233 = vmatpush1.bf16.msra.mxu0 0
    %2234 = vmatprep.subr.bf16.mxu0 0
    %2235 = vmatpush1.bf16.msra.mxu0 0
    %2236 = vmatprep.subr.bf16.mxu0 0
    %2237 = vmatpush1.bf16.msra.mxu0 0
    %2238 = vmatprep.subr.bf16.mxu0 0
    %2239 = vmatpush1.bf16.msra.mxu0 0
    %2240 = vmatprep.subr.bf16.mxu0 0
    %2241 = vmatpush1.bf16.msra.mxu0 0
    %2242 = vmatprep.subr.bf16.mxu0 0
    %2243 = vmatpush1.bf16.msra.mxu0 0
    %2244 = vmatprep.subr.bf16.mxu0 0
    %2245 = vmatpush1.bf16.msra.mxu0 %v2226
    %2246 = vmatprep.subr.bf16.mxu0 0
    %2247 = vmatpush1.bf16.msra.mxu0 %v2225
    %2248 = vmatprep.subr.bf16.mxu0 0
    %2249 = vmatpush2.bf16.msra.mxu0 0
    %2250 = vmatprep.subr.bf16.mxu0 0
    %2251 = vmatpush2.bf16.msra.mxu0 0
    %2252 = vmatprep.subr.bf16.mxu0 0
    %2253 = vmatpush2.bf16.msra.mxu0 0
    %2254 = vmatprep.subr.bf16.mxu0 0
    %2255 = vmatpush2.bf16.msra.mxu0 0
    %2256 = vmatprep.subr.bf16.mxu0 0
    %2257 = vmatpush2.bf16.msra.mxu0 0
    %2258 = vmatprep.subr.bf16.mxu0 0
    %2259 = vmatpush2.bf16.msra.mxu0 0
    %2260 = vmatprep.subr.bf16.mxu0 0
    %2261 = vmatpush2.bf16.msra.mxu0 0
    %2262 = vmatprep.subr.bf16.mxu0 0
    %2263 = vmatpush2.bf16.msra.mxu0 0
    %2264 = vmatprep.mubr.bf16.mxu0 0
    %2265 = vmatmul.mubr.bf16.gmra.mxu0 %v2230
    %v2266 = vpop.f32.mrf.mxu0
    %v2267 = vadd.f32 %v2215, %v2266
    %v2268 = vpop.f32.mrf.mxu0
    %v2269 = vpop.f32.mrf.mxu0
    %v2270 = vadd.f32 %v2215, %v2269
    %v2271 = vpop.f32.mrf.mxu0
    %2272 = vdwg.mxu0
    %2273 = vst.msk [vmem:[#allocation8] sm:$0xff] %vm83, %v2267
    %2274 = vst.msk [vmem:[#allocation8 + $0x8] sm:$0xff] %vm83, %v2270
    // Predicated region
    $region30: #{tpu_custom_call.1} parent=1 // pred_check
      _
    $region31: #{tpu_custom_call.1} parent=1 // pred_check_branch
      %2276 = sbr.rel (0) target = $region33
    $region32: #{tpu_custom_call.1} parent=1 // pred_region
      %s2278 = ssub.s32 256, 256
      %2279 = vsyncadd [#allocation4], %s2278
      %s2280 = sshll.u32 [#allocation8], 4
      %s2281 = int_to_ptr.vmem [resolvable:$true] %s2280
      %2286 = dma.vmem_to_hbm [thread:$0]  %s2281, 256, %s4, [#allocation4], 128, 128, 8
    $region33: #{tpu_custom_call.1} parent=1 // pred_fallthru
      _
    // Predicated region
    $region34: #{tpu_custom_call.1} parent=1 // pred_check
      _
    $region35: #{tpu_custom_call.1} parent=1 // pred_check_branch
      %2288 = sbr.rel (0) target = $region37
    $region36: #{tpu_custom_call.1} parent=1 // pred_region
      %2289 = dma.done [#allocation4], 256
    $region37: #{tpu_custom_call.1} parent=1 // pred_fallthru
      _
    %2290 = vsyncpa [#allocation3], 1
    %2291 = vsyncpa [#allocation6], 1
    %2292 = vsyncpa [#allocation4], 1

</llo_original>
